<compile_context>
chip_gen: v7x
topology: tpu7x:2x2x1
jax: 0.10.0
libtpu: 0.0.40
codegen_flags: <defaults>
</compile_context>

<pallas_src>
import jax
import jax.numpy as jnp
from jax.experimental import pallas as pl
from jax.experimental.pallas import tpu as pltpu

# ---- config (stand-ins for the argparse values in the original script) ----
ACTION_SPACE = 4                      # args.action_space_dim
STATE_SPACE_DIM = 8                   # args.state_space_dim
STATE_SPACE = STATE_SPACE_DIM * 3     # = 24 (state_space = state_space_dim * 3)
NT_STATES = 4                         # nt
PT_STATES = 6                         # pt
SYMBOL_DIM = 32
Z_DIM = 16

ROOT_RULE_NUM = NT_STATES * NT_STATES               # 16
NT_NT_RULE_NUM = (NT_STATES + PT_STATES) ** 2       # 100
PT_RULE_NUM = ACTION_SPACE                          # 4
PT_NT = PT_STATES + NT_STATES                       # 10

NEG = -1e30                                         # mask value for padded lanes

# ---- packed-slab static layout -------------------------------------------
# w_slab: (17, 128, 128) f32 — every weight matrix zero-padded to 128x128.
W_STATE_Z = 0
W_ROOT = dict(w0e=1, w0z=2, r1a=3, r1b=4, r2a=5, r2b=6, wo=7)
W_NT_E, W_NT_Z = 8, 9
W_PT = dict(w0e=10, w0z=11, r1a=12, r1b=13, r2a=14, r2b=15, wo=16)
N_W_SLAB = 17

# aux_slab: (40, 128) f32 — rows 0..13 biases, rows 16.. embeddings (8-row
# blocks so the kernel only ever reads sublane-aligned (8,128) tiles).
B_STATE = 0
B_ROOT = dict(b0=1, r1a=2, r1b=3, r2a=4, r2b=5, bo=6)
B_NT_ROW = 7
B_PT = dict(b0=8, r1a=9, r1b=10, r2a=11, r2b=12, bo=13)
EMB_ROOT_ROW = 16
EMB_NT_ROW = 24
EMB_PT_ROW = 32
AUX_ROWS = 40

# output slab rows
ROW_ROOT, ROW_NT, ROW_PT = 0, 8, 16
OUT_ROWS = 24


# --------------------------------------------------------------------------
# Fused kernel: z once, all three branch MLPs, one lane-dense log-prob slab.
# --------------------------------------------------------------------------
def _policy_kernel(onehot_ref, w_ref, aux_ref, out_ref):
    def W(i):                       # (128, 128) weight tile, static index
        return w_ref[i]

    def B(i):                       # (1, 128) bias row, static index
        return aux_ref[i:i + 1, :]

    def dot(a, b):
        return jnp.dot(a, b, preferred_element_type=jnp.float32)

    # shared state embedding z = relu(one_hot(state) @ Wz + bz) — computed ONCE
    z = jnp.maximum(dot(onehot_ref[0:1, :], W(W_STATE_Z)) + B(B_STATE), 0.0)

    def deep_mlp(emb, wi, bi):
        # Linear(symbol+z -> symbol), 2x ResidualLayer, Linear(symbol -> out)
        h = dot(emb, W(wi['w0e'])) + dot(z, W(wi['w0z'])) + B(bi['b0'])
        t = jnp.maximum(dot(h, W(wi['r1a'])) + B(bi['r1a']), 0.0)
        h = jnp.maximum(dot(t, W(wi['r1b'])) + B(bi['r1b']), 0.0) + h
        t = jnp.maximum(dot(h, W(wi['r2a'])) + B(bi['r2a']), 0.0)
        h = jnp.maximum(dot(t, W(wi['r2b'])) + B(bi['r2b']), 0.0) + h
        return dot(h, W(wi['wo'])) + B(bi['bo'])

    lane = jax.lax.broadcasted_iota(jnp.int32, (8, 128), 1)

    def log_softmax(scores, n_valid):
        s = jnp.where(lane < n_valid, scores, NEG)      # mask padded lanes
        m = jnp.max(s, axis=-1, keepdims=True)
        lse = jnp.log(jnp.sum(jnp.exp(s - m), axis=-1, keepdims=True))
        return s - m - lse

    root_scores = deep_mlp(aux_ref[EMB_ROOT_ROW:EMB_ROOT_ROW + 8, :],
                           W_ROOT, B_ROOT)
    nt_scores = (dot(aux_ref[EMB_NT_ROW:EMB_NT_ROW + 8, :], W(W_NT_E))
                 + dot(z, W(W_NT_Z)) + B(B_NT_ROW))
    pt_scores = deep_mlp(aux_ref[EMB_PT_ROW:EMB_PT_ROW + 8, :],
                         W_PT, B_PT)

    # three sublane-aligned (8,128) unmasked stores into one lane-dense slab
    out_ref[ROW_ROOT:ROW_ROOT + 8, :] = log_softmax(root_scores, ROOT_RULE_NUM)
    out_ref[ROW_NT:ROW_NT + 8, :] = log_softmax(nt_scores, NT_NT_RULE_NUM)
    out_ref[ROW_PT:ROW_PT + 8, :] = log_softmax(pt_scores, PT_RULE_NUM)


def _fused_logprobs(onehot, w_slab, aux_slab):
    vmem = lambda: pl.BlockSpec(memory_space=pltpu.MemorySpace.VMEM)
    return pl.pallas_call(
        _policy_kernel,
        out_shape=jax.ShapeDtypeStruct((OUT_ROWS, 128), jnp.float32),
        in_specs=[vmem(), vmem(), vmem()],
        out_specs=vmem(),
    )(onehot, w_slab, aux_slab)


# --------------------------------------------------------------------------
# Single jitted step: build one-hot, run fused kernel, sample + bookkeeping,
# everything stays traced (no host syncs).  `code` == -1 means the 'S' root.
# --------------------------------------------------------------------------
@jax.jit
def _policy_step(code, state, w_slab, aux_slab, key):
    oh = jax.nn.one_hot(state[:, 0], 3, dtype=jnp.float32).reshape(-1)  # (24,)
    onehot = jnp.zeros((8, 128), jnp.float32).at[0, :STATE_SPACE].set(oh)

    logp = _fused_logprobs(onehot, w_slab, aux_slab)        # (24, 128) log-probs

    is_root = code < 0
    nt_idx = code - ACTION_SPACE
    is_nt = jnp.logical_and(jnp.logical_not(is_root), nt_idx < NT_STATES)
    pt_idx = nt_idx - NT_STATES

    row = jnp.where(is_root, ROW_ROOT,
                    jnp.where(is_nt, ROW_NT + nt_idx, ROW_PT + pt_idx))
    logp_row = jax.lax.dynamic_index_in_dim(logp, row, axis=0, keepdims=False)

    rule = jax.random.categorical(key, logp_row).astype(jnp.int32)
    log_prob = logp_row[rule]

    left = jnp.where(is_root, rule // NT_STATES + ACTION_SPACE,
                     jnp.where(is_nt, (rule + 1) // PT_NT + ACTION_SPACE - 1,
                               rule))
    right = jnp.where(is_root, rule % NT_STATES + ACTION_SPACE,
                      jnp.where(is_nt, (rule + 1) % PT_NT + ACTION_SPACE - 1,
                                -1))
    return logp_row, rule, log_prob, left, right


def policy_forward(nt, state, params, key, use_mean=True):
    """Policy.forward equivalent (use_lstm=False).  Returns
    (log_prob, rule_prob, left, right); log_prob/left/right are on-device
    int32/f32 scalars (no blocking int() conversion in the hot path)."""
    code = -1 if nt == 'S' else int(nt)
    logp_row, rule, log_prob, left, right = _policy_step(
        jnp.int32(code), state, params['w_slab'], params['aux_slab'], key)
    if nt == 'S':
        return log_prob, jnp.exp(logp_row[:ROOT_RULE_NUM]), left, right
    if code - ACTION_SPACE < NT_STATES:
        return log_prob, jnp.exp(logp_row[:NT_NT_RULE_NUM]), left, right
    return log_prob, jnp.exp(logp_row[:PT_RULE_NUM]), left, None


# --------------------------------------------------------------------------
# Parameter construction (deterministic, synthetic) + slab packing.
# --------------------------------------------------------------------------
def init_params(key):
    keys = iter(jax.random.split(key, 64))

    def lin(in_d, out_d):
        w = jax.random.normal(next(keys), (in_d, out_d), jnp.float32) / jnp.sqrt(
            jnp.float32(in_d))
        b = jax.random.normal(next(keys), (1, out_d), jnp.float32) * 0.01
        return w, b

    root_emb = jax.random.normal(next(keys), (1, SYMBOL_DIM), jnp.float32)
    nt_emb = jax.random.normal(next(keys), (NT_STATES, SYMBOL_DIM), jnp.float32)
    pt_emb = jax.random.normal(next(keys), (PT_STATES, SYMBOL_DIM), jnp.float32)
    wz, bz = lin(STATE_SPACE, Z_DIM)                 # Linear(24, 16)

    def deep(out_dim):
        w0, b0 = lin(SYMBOL_DIM + Z_DIM, SYMBOL_DIM)
        return dict(
            w0e=w0[:SYMBOL_DIM], w0z=w0[SYMBOL_DIM:], b0=b0,
            r1a=lin(SYMBOL_DIM, SYMBOL_DIM), r1b=lin(SYMBOL_DIM, SYMBOL_DIM),
            r2a=lin(SYMBOL_DIM, SYMBOL_DIM), r2b=lin(SYMBOL_DIM, SYMBOL_DIM),
            wo=lin(SYMBOL_DIM, out_dim))

    root = deep(ROOT_RULE_NUM)
    ptm = deep(PT_RULE_NUM)
    wn, bn = lin(SYMBOL_DIM + Z_DIM, NT_NT_RULE_NUM)  # Linear(48, 100)

    raw = dict(root_emb=root_emb, nt_emb=nt_emb, pt_emb=pt_emb,
               wz=wz, bz=bz, root=root, pt=ptm,
               wn_e=wn[:SYMBOL_DIM], wn_z=wn[SYMBOL_DIM:], bn=bn)

    # ---- pack weights into one (17,128,128) slab (zero-padded tiles) ------
    def pad_w(w):
        p = jnp.zeros((128, 128), jnp.float32)
        return p.at[:w.shape[0], :w.shape[1]].set(w)

    w_list = [
        wz,                                                        # 0
        root['w0e'], root['w0z'],                                  # 1, 2
        root['r1a'][0], root['r1b'][0],                            # 3, 4
        root['r2a'][0], root['r2b'][0],                            # 5, 6
        root['wo'][0],                                             # 7
        raw['wn_e'], raw['wn_z'],                                  # 8, 9
        ptm['w0e'], ptm['w0z'],                                    # 10, 11
        ptm['r1a'][0], ptm['r1b'][0],                              # 12, 13
        ptm['r2a'][0], ptm['r2b'][0],                              # 14, 15
        ptm['wo'][0],                                              # 16
    ]
    assert len(w_list) == N_W_SLAB
    w_slab = jnp.stack([pad_w(w) for w in w_list])                 # (17,128,128)

    # ---- pack biases + embeddings into one (40,128) slab ------------------
    b_list = [
        bz,                                                        # row 0
        root['b0'], root['r1a'][1], root['r1b'][1],                # rows 1..3
        root['r2a'][1], root['r2b'][1], root['wo'][1],             # rows 4..6
        bn,                                                        # row 7
        ptm['b0'], ptm['r1a'][1], ptm['r1b'][1],                   # rows 8..10
        ptm['r2a'][1], ptm['r2b'][1], ptm['wo'][1],                # rows 11..13
    ]
    aux = jnp.zeros((AUX_ROWS, 128), jnp.float32)
    for i, b in enumerate(b_list):
        aux = aux.at[i, :b.shape[1]].set(b[0])
    aux = aux.at[EMB_ROOT_ROW:EMB_ROOT_ROW + 1, :SYMBOL_DIM].set(root_emb)
    aux = aux.at[EMB_NT_ROW:EMB_NT_ROW + NT_STATES, :SYMBOL_DIM].set(nt_emb)
    aux = aux.at[EMB_PT_ROW:EMB_PT_ROW + PT_STATES, :SYMBOL_DIM].set(pt_emb)

    return dict(w_slab=w_slab, aux_slab=aux, raw=raw)


# --------------------------------------------------------------------------
# Plain-JAX reference (for correctness check only).
# --------------------------------------------------------------------------
def _ref_probs(raw, state):
    oh = jax.nn.one_hot(state[:, 0], 3, dtype=jnp.float32).reshape(1, -1)
    z = jax.nn.relu(oh @ raw['wz'] + raw['bz'])

    def deep(emb, m):
        h = emb @ m['w0e'] + z @ m['w0z'] + m['b0']
        t = jax.nn.relu(h @ m['r1a'][0] + m['r1a'][1])
        h = jax.nn.relu(t @ m['r1b'][0] + m['r1b'][1]) + h
        t = jax.nn.relu(h @ m['r2a'][0] + m['r2a'][1])
        h = jax.nn.relu(t @ m['r2b'][0] + m['r2b'][1]) + h
        return h @ m['wo'][0] + m['wo'][1]

    root_p = jax.nn.softmax(deep(raw['root_emb'], raw['root'])[0])
    nt_p = jax.nn.softmax(raw['nt_emb'] @ raw['wn_e'] + z @ raw['wn_z']
                          + raw['bn'], axis=-1)
    pt_p = jax.nn.softmax(deep(raw['pt_emb'], raw['pt']), axis=-1)
    return root_p, nt_p, pt_p


if __name__ == "__main__":
    root_key = jax.random.PRNGKey(0)
    pkey, skey, k1, k2, k3 = jax.random.split(root_key, 5)

    params = init_params(pkey)
    # state: indices in {0,1,2}, shape (state_space//3, 1) — as in the torch
    # scatter-based one-hot construction.
    state = jax.random.randint(skey, (STATE_SPACE // 3, 1), 0, 3, dtype=jnp.int32)

    # 'S' (root) branch — 16 rules.
    lp_s, prob_s, l_s, r_s = policy_forward('S', state, params, k1)
    # Nonterminal branch — 100 rules.
    nt_sym = ACTION_SPACE + 1
    lp_n, prob_n, l_n, r_n = policy_forward(nt_sym, state, params, k2)
    # Preterminal branch — action_space rules.
    pt_sym = ACTION_SPACE + NT_STATES + 2
    lp_p, prob_p, l_p, r_p = policy_forward(pt_sym, state, params, k3)

    jax.block_until_ready(prob_s)
    jax.block_until_ready(prob_n)
    jax.block_until_ready(prob_p)

    assert prob_s.shape == (ROOT_RULE_NUM,)
    assert prob_n.shape == (NT_NT_RULE_NUM,)
    assert prob_p.shape == (PT_RULE_NUM,)

    # correctness vs. plain-JAX reference (loose tol: MXU default precision)
    root_p, nt_p, pt_p = _ref_probs(params['raw'], state)
    assert jnp.allclose(prob_s, root_p, atol=3e-2), "root branch mismatch"
    assert jnp.allclose(prob_n, nt_p[nt_sym - ACTION_SPACE], atol=3e-2), \
        "nt branch mismatch"
    assert jnp.allclose(prob_p, pt_p[pt_sym - ACTION_SPACE - NT_STATES],
                        atol=3e-2), "pt branch mismatch"
    assert abs(float(jnp.sum(prob_s)) - 1.0) < 1e-3
    assert abs(float(jnp.sum(prob_n)) - 1.0) < 1e-3
    assert abs(float(jnp.sum(prob_p)) - 1.0) < 1e-3

    # children bookkeeping stayed on-device; convert only here for the test.
    assert ACTION_SPACE <= int(l_s) < ACTION_SPACE + NT_STATES
    assert ACTION_SPACE <= int(r_s) < ACTION_SPACE + NT_STATES
    assert 0 <= int(l_p) < PT_RULE_NUM
    assert r_p is None

    print("KERNEL_OK")
</pallas_src>

<mosaic_0001>
module attributes {stable_mosaic.version = 11 : i64} {
  func.func @_policy_kernel(%arg0: memref<8x128xf32, #tpu.memory_space<vmem>>, %arg1: memref<17x128x128xf32, #tpu.memory_space<vmem>>, %arg2: memref<40x128xf32, #tpu.memory_space<vmem>>, %arg3: memref<24x128xf32, #tpu.memory_space<vmem>>) attributes {dimension_semantics = [], scalar_prefetch = 0 : i64, scratch_operands = 0 : i64, tpu.core_type = #tpu.core_type<tc>} {
    %c0 = arith.constant 0 : index
    %c0_0 = arith.constant 0 : index
    %0 = vector.load %arg0[%c0, %c0_0] : memref<8x128xf32, #tpu.memory_space<vmem>>, vector<1x128xf32>
    %c0_1 = arith.constant 0 : index
    %c0_2 = arith.constant 0 : index
    %c0_3 = arith.constant 0 : index
    %1 = vector.load %arg1[%c0_1, %c0_2, %c0_3] : memref<17x128x128xf32, #tpu.memory_space<vmem>>, vector<1x128x128xf32>
    %2 = vector.shape_cast %1 : vector<1x128x128xf32> to vector<128x128xf32>
    %cst = arith.constant dense<0.000000e+00> : vector<1x128xf32>
    %3 = tpu.matmul %0, %2, %cst {dimension_numbers = #tpu.dot_dimension_numbers<[1], [0], [0], [1], [0, 0, 1, 1], [], []>} : vector<1x128xf32>, vector<128x128xf32>, vector<1x128xf32> -> vector<1x128xf32>
    %c0_4 = arith.constant 0 : index
    %c0_5 = arith.constant 0 : index
    %4 = vector.load %arg2[%c0_4, %c0_5] : memref<40x128xf32, #tpu.memory_space<vmem>>, vector<1x128xf32>
    %5 = arith.addf %3, %4 : vector<1x128xf32>
    %cst_6 = arith.constant 0.000000e+00 : f32
    %6 = vector.broadcast %cst_6 : f32 to vector<1x128xf32>
    %7 = arith.maximumf %5, %6 : vector<1x128xf32>
    %8 = tpu.iota {dimensions = array<i32: 1>} : vector<8x128xi32>
    %c16 = arith.constant 16 : index
    %c0_7 = arith.constant 0 : index
    %9 = vector.load %arg2[%c16, %c0_7] : memref<40x128xf32, #tpu.memory_space<vmem>>, vector<8x128xf32>
    %c1 = arith.constant 1 : index
    %c0_8 = arith.constant 0 : index
    %c0_9 = arith.constant 0 : index
    %10 = vector.load %arg1[%c1, %c0_8, %c0_9] : memref<17x128x128xf32, #tpu.memory_space<vmem>>, vector<1x128x128xf32>
    %11 = vector.shape_cast %10 : vector<1x128x128xf32> to vector<128x128xf32>
    %cst_10 = arith.constant dense<0.000000e+00> : vector<8x128xf32>
    %12 = tpu.matmul %9, %11, %cst_10 {dimension_numbers = #tpu.dot_dimension_numbers<[1], [0], [0], [1], [0, 0, 1, 1], [], []>} : vector<8x128xf32>, vector<128x128xf32>, vector<8x128xf32> -> vector<8x128xf32>
    %c2 = arith.constant 2 : index
    %c0_11 = arith.constant 0 : index
    %c0_12 = arith.constant 0 : index
    %13 = vector.load %arg1[%c2, %c0_11, %c0_12] : memref<17x128x128xf32, #tpu.memory_space<vmem>>, vector<1x128x128xf32>
    %14 = vector.shape_cast %13 : vector<1x128x128xf32> to vector<128x128xf32>
    %cst_13 = arith.constant dense<0.000000e+00> : vector<1x128xf32>
    %15 = tpu.matmul %7, %14, %cst_13 {dimension_numbers = #tpu.dot_dimension_numbers<[1], [0], [0], [1], [0, 0, 1, 1], [], []>} : vector<1x128xf32>, vector<128x128xf32>, vector<1x128xf32> -> vector<1x128xf32>
    %16 = vector.broadcast %15 : vector<1x128xf32> to vector<8x128xf32>
    %17 = arith.addf %12, %16 : vector<8x128xf32>
    %c1_14 = arith.constant 1 : index
    %c0_15 = arith.constant 0 : index
    %18 = vector.load %arg2[%c1_14, %c0_15] : memref<40x128xf32, #tpu.memory_space<vmem>>, vector<1x128xf32>
    %19 = vector.broadcast %18 : vector<1x128xf32> to vector<8x128xf32>
    %20 = arith.addf %17, %19 : vector<8x128xf32>
    %c3 = arith.constant 3 : index
    %c0_16 = arith.constant 0 : index
    %c0_17 = arith.constant 0 : index
    %21 = vector.load %arg1[%c3, %c0_16, %c0_17] : memref<17x128x128xf32, #tpu.memory_space<vmem>>, vector<1x128x128xf32>
    %22 = vector.shape_cast %21 : vector<1x128x128xf32> to vector<128x128xf32>
    %cst_18 = arith.constant dense<0.000000e+00> : vector<8x128xf32>
    %23 = tpu.matmul %20, %22, %cst_18 {dimension_numbers = #tpu.dot_dimension_numbers<[1], [0], [0], [1], [0, 0, 1, 1], [], []>} : vector<8x128xf32>, vector<128x128xf32>, vector<8x128xf32> -> vector<8x128xf32>
    %c2_19 = arith.constant 2 : index
    %c0_20 = arith.constant 0 : index
    %24 = vector.load %arg2[%c2_19, %c0_20] : memref<40x128xf32, #tpu.memory_space<vmem>>, vector<1x128xf32>
    %25 = vector.broadcast %24 : vector<1x128xf32> to vector<8x128xf32>
    %26 = arith.addf %23, %25 : vector<8x128xf32>
    %cst_21 = arith.constant 0.000000e+00 : f32
    %27 = vector.broadcast %cst_21 : f32 to vector<8x128xf32>
    %28 = arith.maximumf %26, %27 : vector<8x128xf32>
    %c4 = arith.constant 4 : index
    %c0_22 = arith.constant 0 : index
    %c0_23 = arith.constant 0 : index
    %29 = vector.load %arg1[%c4, %c0_22, %c0_23] : memref<17x128x128xf32, #tpu.memory_space<vmem>>, vector<1x128x128xf32>
    %30 = vector.shape_cast %29 : vector<1x128x128xf32> to vector<128x128xf32>
    %cst_24 = arith.constant dense<0.000000e+00> : vector<8x128xf32>
    %31 = tpu.matmul %28, %30, %cst_24 {dimension_numbers = #tpu.dot_dimension_numbers<[1], [0], [0], [1], [0, 0, 1, 1], [], []>} : vector<8x128xf32>, vector<128x128xf32>, vector<8x128xf32> -> vector<8x128xf32>
    %c3_25 = arith.constant 3 : index
    %c0_26 = arith.constant 0 : index
    %32 = vector.load %arg2[%c3_25, %c0_26] : memref<40x128xf32, #tpu.memory_space<vmem>>, vector<1x128xf32>
    %33 = vector.broadcast %32 : vector<1x128xf32> to vector<8x128xf32>
    %34 = arith.addf %31, %33 : vector<8x128xf32>
    %cst_27 = arith.constant 0.000000e+00 : f32
    %35 = vector.broadcast %cst_27 : f32 to vector<8x128xf32>
    %36 = arith.maximumf %34, %35 : vector<8x128xf32>
    %37 = arith.addf %36, %20 : vector<8x128xf32>
    %c5 = arith.constant 5 : index
    %c0_28 = arith.constant 0 : index
    %c0_29 = arith.constant 0 : index
    %38 = vector.load %arg1[%c5, %c0_28, %c0_29] : memref<17x128x128xf32, #tpu.memory_space<vmem>>, vector<1x128x128xf32>
    %39 = vector.shape_cast %38 : vector<1x128x128xf32> to vector<128x128xf32>
    %cst_30 = arith.constant dense<0.000000e+00> : vector<8x128xf32>
    %40 = tpu.matmul %37, %39, %cst_30 {dimension_numbers = #tpu.dot_dimension_numbers<[1], [0], [0], [1], [0, 0, 1, 1], [], []>} : vector<8x128xf32>, vector<128x128xf32>, vector<8x128xf32> -> vector<8x128xf32>
    %c4_31 = arith.constant 4 : index
    %c0_32 = arith.constant 0 : index
    %41 = vector.load %arg2[%c4_31, %c0_32] : memref<40x128xf32, #tpu.memory_space<vmem>>, vector<1x128xf32>
    %42 = vector.broadcast %41 : vector<1x128xf32> to vector<8x128xf32>
    %43 = arith.addf %40, %42 : vector<8x128xf32>
    %cst_33 = arith.constant 0.000000e+00 : f32
    %44 = vector.broadcast %cst_33 : f32 to vector<8x128xf32>
    %45 = arith.maximumf %43, %44 : vector<8x128xf32>
    %c6 = arith.constant 6 : index
    %c0_34 = arith.constant 0 : index
    %c0_35 = arith.constant 0 : index
    %46 = vector.load %arg1[%c6, %c0_34, %c0_35] : memref<17x128x128xf32, #tpu.memory_space<vmem>>, vector<1x128x128xf32>
    %47 = vector.shape_cast %46 : vector<1x128x128xf32> to vector<128x128xf32>
    %cst_36 = arith.constant dense<0.000000e+00> : vector<8x128xf32>
    %48 = tpu.matmul %45, %47, %cst_36 {dimension_numbers = #tpu.dot_dimension_numbers<[1], [0], [0], [1], [0, 0, 1, 1], [], []>} : vector<8x128xf32>, vector<128x128xf32>, vector<8x128xf32> -> vector<8x128xf32>
    %c5_37 = arith.constant 5 : index
    %c0_38 = arith.constant 0 : index
    %49 = vector.load %arg2[%c5_37, %c0_38] : memref<40x128xf32, #tpu.memory_space<vmem>>, vector<1x128xf32>
    %50 = vector.broadcast %49 : vector<1x128xf32> to vector<8x128xf32>
    %51 = arith.addf %48, %50 : vector<8x128xf32>
    %cst_39 = arith.constant 0.000000e+00 : f32
    %52 = vector.broadcast %cst_39 : f32 to vector<8x128xf32>
    %53 = arith.maximumf %51, %52 : vector<8x128xf32>
    %54 = arith.addf %53, %37 : vector<8x128xf32>
    %c7 = arith.constant 7 : index
    %c0_40 = arith.constant 0 : index
    %c0_41 = arith.constant 0 : index
    %55 = vector.load %arg1[%c7, %c0_40, %c0_41] : memref<17x128x128xf32, #tpu.memory_space<vmem>>, vector<1x128x128xf32>
    %56 = vector.shape_cast %55 : vector<1x128x128xf32> to vector<128x128xf32>
    %cst_42 = arith.constant dense<0.000000e+00> : vector<8x128xf32>
    %57 = tpu.matmul %54, %56, %cst_42 {dimension_numbers = #tpu.dot_dimension_numbers<[1], [0], [0], [1], [0, 0, 1, 1], [], []>} : vector<8x128xf32>, vector<128x128xf32>, vector<8x128xf32> -> vector<8x128xf32>
    %c6_43 = arith.constant 6 : index
    %c0_44 = arith.constant 0 : index
    %58 = vector.load %arg2[%c6_43, %c0_44] : memref<40x128xf32, #tpu.memory_space<vmem>>, vector<1x128xf32>
    %59 = vector.broadcast %58 : vector<1x128xf32> to vector<8x128xf32>
    %60 = arith.addf %57, %59 : vector<8x128xf32>
    %c24 = arith.constant 24 : index
    %c0_45 = arith.constant 0 : index
    %61 = vector.load %arg2[%c24, %c0_45] : memref<40x128xf32, #tpu.memory_space<vmem>>, vector<8x128xf32>
    %c8 = arith.constant 8 : index
    %c0_46 = arith.constant 0 : index
    %c0_47 = arith.constant 0 : index
    %62 = vector.load %arg1[%c8, %c0_46, %c0_47] : memref<17x128x128xf32, #tpu.memory_space<vmem>>, vector<1x128x128xf32>
    %63 = vector.shape_cast %62 : vector<1x128x128xf32> to vector<128x128xf32>
    %cst_48 = arith.constant dense<0.000000e+00> : vector<8x128xf32>
    %64 = tpu.matmul %61, %63, %cst_48 {dimension_numbers = #tpu.dot_dimension_numbers<[1], [0], [0], [1], [0, 0, 1, 1], [], []>} : vector<8x128xf32>, vector<128x128xf32>, vector<8x128xf32> -> vector<8x128xf32>
    %c9 = arith.constant 9 : index
    %c0_49 = arith.constant 0 : index
    %c0_50 = arith.constant 0 : index
    %65 = vector.load %arg1[%c9, %c0_49, %c0_50] : memref<17x128x128xf32, #tpu.memory_space<vmem>>, vector<1x128x128xf32>
    %66 = vector.shape_cast %65 : vector<1x128x128xf32> to vector<128x128xf32>
    %cst_51 = arith.constant dense<0.000000e+00> : vector<1x128xf32>
    %67 = tpu.matmul %7, %66, %cst_51 {dimension_numbers = #tpu.dot_dimension_numbers<[1], [0], [0], [1], [0, 0, 1, 1], [], []>} : vector<1x128xf32>, vector<128x128xf32>, vector<1x128xf32> -> vector<1x128xf32>
    %68 = vector.broadcast %67 : vector<1x128xf32> to vector<8x128xf32>
    %69 = arith.addf %64, %68 : vector<8x128xf32>
    %c7_52 = arith.constant 7 : index
    %c0_53 = arith.constant 0 : index
    %70 = vector.load %arg2[%c7_52, %c0_53] : memref<40x128xf32, #tpu.memory_space<vmem>>, vector<1x128xf32>
    %71 = vector.broadcast %70 : vector<1x128xf32> to vector<8x128xf32>
    %72 = arith.addf %69, %71 : vector<8x128xf32>
    %c32 = arith.constant 32 : index
    %c0_54 = arith.constant 0 : index
    %73 = vector.load %arg2[%c32, %c0_54] : memref<40x128xf32, #tpu.memory_space<vmem>>, vector<8x128xf32>
    %c10 = arith.constant 10 : index
    %c0_55 = arith.constant 0 : index
    %c0_56 = arith.constant 0 : index
    %74 = vector.load %arg1[%c10, %c0_55, %c0_56] : memref<17x128x128xf32, #tpu.memory_space<vmem>>, vector<1x128x128xf32>
    %75 = vector.shape_cast %74 : vector<1x128x128xf32> to vector<128x128xf32>
    %cst_57 = arith.constant dense<0.000000e+00> : vector<8x128xf32>
    %76 = tpu.matmul %73, %75, %cst_57 {dimension_numbers = #tpu.dot_dimension_numbers<[1], [0], [0], [1], [0, 0, 1, 1], [], []>} : vector<8x128xf32>, vector<128x128xf32>, vector<8x128xf32> -> vector<8x128xf32>
    %c11 = arith.constant 11 : index
    %c0_58 = arith.constant 0 : index
    %c0_59 = arith.constant 0 : index
    %77 = vector.load %arg1[%c11, %c0_58, %c0_59] : memref<17x128x128xf32, #tpu.memory_space<vmem>>, vector<1x128x128xf32>
    %78 = vector.shape_cast %77 : vector<1x128x128xf32> to vector<128x128xf32>
    %cst_60 = arith.constant dense<0.000000e+00> : vector<1x128xf32>
    %79 = tpu.matmul %7, %78, %cst_60 {dimension_numbers = #tpu.dot_dimension_numbers<[1], [0], [0], [1], [0, 0, 1, 1], [], []>} : vector<1x128xf32>, vector<128x128xf32>, vector<1x128xf32> -> vector<1x128xf32>
    %80 = vector.broadcast %79 : vector<1x128xf32> to vector<8x128xf32>
    %81 = arith.addf %76, %80 : vector<8x128xf32>
    %c8_61 = arith.constant 8 : index
    %c0_62 = arith.constant 0 : index
    %82 = vector.load %arg2[%c8_61, %c0_62] : memref<40x128xf32, #tpu.memory_space<vmem>>, vector<1x128xf32>
    %83 = vector.broadcast %82 : vector<1x128xf32> to vector<8x128xf32>
    %84 = arith.addf %81, %83 : vector<8x128xf32>
    %c12 = arith.constant 12 : index
    %c0_63 = arith.constant 0 : index
    %c0_64 = arith.constant 0 : index
    %85 = vector.load %arg1[%c12, %c0_63, %c0_64] : memref<17x128x128xf32, #tpu.memory_space<vmem>>, vector<1x128x128xf32>
    %86 = vector.shape_cast %85 : vector<1x128x128xf32> to vector<128x128xf32>
    %cst_65 = arith.constant dense<0.000000e+00> : vector<8x128xf32>
    %87 = tpu.matmul %84, %86, %cst_65 {dimension_numbers = #tpu.dot_dimension_numbers<[1], [0], [0], [1], [0, 0, 1, 1], [], []>} : vector<8x128xf32>, vector<128x128xf32>, vector<8x128xf32> -> vector<8x128xf32>
    %c9_66 = arith.constant 9 : index
    %c0_67 = arith.constant 0 : index
    %88 = vector.load %arg2[%c9_66, %c0_67] : memref<40x128xf32, #tpu.memory_space<vmem>>, vector<1x128xf32>
    %89 = vector.broadcast %88 : vector<1x128xf32> to vector<8x128xf32>
    %90 = arith.addf %87, %89 : vector<8x128xf32>
    %cst_68 = arith.constant 0.000000e+00 : f32
    %91 = vector.broadcast %cst_68 : f32 to vector<8x128xf32>
    %92 = arith.maximumf %90, %91 : vector<8x128xf32>
    %c13 = arith.constant 13 : index
    %c0_69 = arith.constant 0 : index
    %c0_70 = arith.constant 0 : index
    %93 = vector.load %arg1[%c13, %c0_69, %c0_70] : memref<17x128x128xf32, #tpu.memory_space<vmem>>, vector<1x128x128xf32>
    %94 = vector.shape_cast %93 : vector<1x128x128xf32> to vector<128x128xf32>
    %cst_71 = arith.constant dense<0.000000e+00> : vector<8x128xf32>
    %95 = tpu.matmul %92, %94, %cst_71 {dimension_numbers = #tpu.dot_dimension_numbers<[1], [0], [0], [1], [0, 0, 1, 1], [], []>} : vector<8x128xf32>, vector<128x128xf32>, vector<8x128xf32> -> vector<8x128xf32>
    %c10_72 = arith.constant 10 : index
    %c0_73 = arith.constant 0 : index
    %96 = vector.load %arg2[%c10_72, %c0_73] : memref<40x128xf32, #tpu.memory_space<vmem>>, vector<1x128xf32>
    %97 = vector.broadcast %96 : vector<1x128xf32> to vector<8x128xf32>
    %98 = arith.addf %95, %97 : vector<8x128xf32>
    %cst_74 = arith.constant 0.000000e+00 : f32
    %99 = vector.broadcast %cst_74 : f32 to vector<8x128xf32>
    %100 = arith.maximumf %98, %99 : vector<8x128xf32>
    %101 = arith.addf %100, %84 : vector<8x128xf32>
    %c14 = arith.constant 14 : index
    %c0_75 = arith.constant 0 : index
    %c0_76 = arith.constant 0 : index
    %102 = vector.load %arg1[%c14, %c0_75, %c0_76] : memref<17x128x128xf32, #tpu.memory_space<vmem>>, vector<1x128x128xf32>
    %103 = vector.shape_cast %102 : vector<1x128x128xf32> to vector<128x128xf32>
    %cst_77 = arith.constant dense<0.000000e+00> : vector<8x128xf32>
    %104 = tpu.matmul %101, %103, %cst_77 {dimension_numbers = #tpu.dot_dimension_numbers<[1], [0], [0], [1], [0, 0, 1, 1], [], []>} : vector<8x128xf32>, vector<128x128xf32>, vector<8x128xf32> -> vector<8x128xf32>
    %c11_78 = arith.constant 11 : index
    %c0_79 = arith.constant 0 : index
    %105 = vector.load %arg2[%c11_78, %c0_79] : memref<40x128xf32, #tpu.memory_space<vmem>>, vector<1x128xf32>
    %106 = vector.broadcast %105 : vector<1x128xf32> to vector<8x128xf32>
    %107 = arith.addf %104, %106 : vector<8x128xf32>
    %cst_80 = arith.constant 0.000000e+00 : f32
    %108 = vector.broadcast %cst_80 : f32 to vector<8x128xf32>
    %109 = arith.maximumf %107, %108 : vector<8x128xf32>
    %c15 = arith.constant 15 : index
    %c0_81 = arith.constant 0 : index
    %c0_82 = arith.constant 0 : index
    %110 = vector.load %arg1[%c15, %c0_81, %c0_82] : memref<17x128x128xf32, #tpu.memory_space<vmem>>, vector<1x128x128xf32>
    %111 = vector.shape_cast %110 : vector<1x128x128xf32> to vector<128x128xf32>
    %cst_83 = arith.constant dense<0.000000e+00> : vector<8x128xf32>
    %112 = tpu.matmul %109, %111, %cst_83 {dimension_numbers = #tpu.dot_dimension_numbers<[1], [0], [0], [1], [0, 0, 1, 1], [], []>} : vector<8x128xf32>, vector<128x128xf32>, vector<8x128xf32> -> vector<8x128xf32>
    %c12_84 = arith.constant 12 : index
    %c0_85 = arith.constant 0 : index
    %113 = vector.load %arg2[%c12_84, %c0_85] : memref<40x128xf32, #tpu.memory_space<vmem>>, vector<1x128xf32>
    %114 = vector.broadcast %113 : vector<1x128xf32> to vector<8x128xf32>
    %115 = arith.addf %112, %114 : vector<8x128xf32>
    %cst_86 = arith.constant 0.000000e+00 : f32
    %116 = vector.broadcast %cst_86 : f32 to vector<8x128xf32>
    %117 = arith.maximumf %115, %116 : vector<8x128xf32>
    %118 = arith.addf %117, %101 : vector<8x128xf32>
    %c16_87 = arith.constant 16 : index
    %c0_88 = arith.constant 0 : index
    %c0_89 = arith.constant 0 : index
    %119 = vector.load %arg1[%c16_87, %c0_88, %c0_89] : memref<17x128x128xf32, #tpu.memory_space<vmem>>, vector<1x128x128xf32>
    %120 = vector.shape_cast %119 : vector<1x128x128xf32> to vector<128x128xf32>
    %cst_90 = arith.constant dense<0.000000e+00> : vector<8x128xf32>
    %121 = tpu.matmul %118, %120, %cst_90 {dimension_numbers = #tpu.dot_dimension_numbers<[1], [0], [0], [1], [0, 0, 1, 1], [], []>} : vector<8x128xf32>, vector<128x128xf32>, vector<8x128xf32> -> vector<8x128xf32>
    %c13_91 = arith.constant 13 : index
    %c0_92 = arith.constant 0 : index
    %122 = vector.load %arg2[%c13_91, %c0_92] : memref<40x128xf32, #tpu.memory_space<vmem>>, vector<1x128xf32>
    %123 = vector.broadcast %122 : vector<1x128xf32> to vector<8x128xf32>
    %124 = arith.addf %121, %123 : vector<8x128xf32>
    %c16_i32 = arith.constant 16 : i32
    %125 = vector.broadcast %c16_i32 : i32 to vector<8x128xi32>
    %126 = arith.cmpi slt, %8, %125 : vector<8x128xi32>
    %cst_93 = arith.constant -1.000000e+30 : f32
    %127 = vector.broadcast %cst_93 : f32 to vector<8x128xf32>
    %128 = arith.select %126, %60, %127 : vector<8x128xi1>, vector<8x128xf32>
    %cst_94 = arith.constant dense<0xFF800000> : vector<8xf32>
    %129 = vector.multi_reduction <maximumf>, %128, %cst_94 [1] : vector<8x128xf32> to vector<8xf32>
    %130 = vector.shape_cast %129 : vector<8xf32> to vector<8x1xf32>
    %131 = vector.broadcast %130 : vector<8x1xf32> to vector<8x128xf32>
    %132 = arith.subf %128, %131 : vector<8x128xf32>
    %133 = math.exp %132 : vector<8x128xf32>
    %cst_95 = arith.constant dense<0.000000e+00> : vector<8xf32>
    %134 = vector.multi_reduction <add>, %133, %cst_95 [1] : vector<8x128xf32> to vector<8xf32>
    %135 = vector.shape_cast %134 : vector<8xf32> to vector<8x1xf32>
    %136 = math.log %135 : vector<8x1xf32>
    %137 = vector.broadcast %130 : vector<8x1xf32> to vector<8x128xf32>
    %138 = arith.subf %128, %137 : vector<8x128xf32>
    %139 = vector.broadcast %136 : vector<8x1xf32> to vector<8x128xf32>
    %140 = arith.subf %138, %139 : vector<8x128xf32>
    %c0_96 = arith.constant 0 : index
    %c0_97 = arith.constant 0 : index
    %141 = vector.load %arg3[%c0_96, %c0_97] : memref<24x128xf32, #tpu.memory_space<vmem>>, vector<8x128xf32>
    tpu.vector_store %arg3[%c0_96, %c0_97], %140 {strides = array<i32>} : memref<24x128xf32, #tpu.memory_space<vmem>>, vector<8x128xf32>,
    %c100_i32 = arith.constant 100 : i32
    %142 = vector.broadcast %c100_i32 : i32 to vector<8x128xi32>
    %143 = arith.cmpi slt, %8, %142 : vector<8x128xi32>
    %cst_98 = arith.constant -1.000000e+30 : f32
    %144 = vector.broadcast %cst_98 : f32 to vector<8x128xf32>
    %145 = arith.select %143, %72, %144 : vector<8x128xi1>, vector<8x128xf32>
    %cst_99 = arith.constant dense<0xFF800000> : vector<8xf32>
    %146 = vector.multi_reduction <maximumf>, %145, %cst_99 [1] : vector<8x128xf32> to vector<8xf32>
    %147 = vector.shape_cast %146 : vector<8xf32> to vector<8x1xf32>
    %148 = vector.broadcast %147 : vector<8x1xf32> to vector<8x128xf32>
    %149 = arith.subf %145, %148 : vector<8x128xf32>
    %150 = math.exp %149 : vector<8x128xf32>
    %cst_100 = arith.constant dense<0.000000e+00> : vector<8xf32>
    %151 = vector.multi_reduction <add>, %150, %cst_100 [1] : vector<8x128xf32> to vector<8xf32>
    %152 = vector.shape_cast %151 : vector<8xf32> to vector<8x1xf32>
    %153 = math.log %152 : vector<8x1xf32>
    %154 = vector.broadcast %147 : vector<8x1xf32> to vector<8x128xf32>
    %155 = arith.subf %145, %154 : vector<8x128xf32>
    %156 = vector.broadcast %153 : vector<8x1xf32> to vector<8x128xf32>
    %157 = arith.subf %155, %156 : vector<8x128xf32>
    %c8_101 = arith.constant 8 : index
    %c0_102 = arith.constant 0 : index
    %158 = vector.load %arg3[%c8_101, %c0_102] : memref<24x128xf32, #tpu.memory_space<vmem>>, vector<8x128xf32>
    tpu.vector_store %arg3[%c8_101, %c0_102], %157 {strides = array<i32>} : memref<24x128xf32, #tpu.memory_space<vmem>>, vector<8x128xf32>,
    %c4_i32 = arith.constant 4 : i32
    %159 = vector.broadcast %c4_i32 : i32 to vector<8x128xi32>
    %160 = arith.cmpi slt, %8, %159 : vector<8x128xi32>
    %cst_103 = arith.constant -1.000000e+30 : f32
    %161 = vector.broadcast %cst_103 : f32 to vector<8x128xf32>
    %162 = arith.select %160, %124, %161 : vector<8x128xi1>, vector<8x128xf32>
    %cst_104 = arith.constant dense<0xFF800000> : vector<8xf32>
    %163 = vector.multi_reduction <maximumf>, %162, %cst_104 [1] : vector<8x128xf32> to vector<8xf32>
    %164 = vector.shape_cast %163 : vector<8xf32> to vector<8x1xf32>
    %165 = vector.broadcast %164 : vector<8x1xf32> to vector<8x128xf32>
    %166 = arith.subf %162, %165 : vector<8x128xf32>
    %167 = math.exp %166 : vector<8x128xf32>
    %cst_105 = arith.constant dense<0.000000e+00> : vector<8xf32>
    %168 = vector.multi_reduction <add>, %167, %cst_105 [1] : vector<8x128xf32> to vector<8xf32>
    %169 = vector.shape_cast %168 : vector<8xf32> to vector<8x1xf32>
    %170 = math.log %169 : vector<8x1xf32>
    %171 = vector.broadcast %164 : vector<8x1xf32> to vector<8x128xf32>
    %172 = arith.subf %162, %171 : vector<8x128xf32>
    %173 = vector.broadcast %170 : vector<8x1xf32> to vector<8x128xf32>
    %174 = arith.subf %172, %173 : vector<8x128xf32>
    %c16_106 = arith.constant 16 : index
    %c0_107 = arith.constant 0 : index
    %175 = vector.load %arg3[%c16_106, %c0_107] : memref<24x128xf32, #tpu.memory_space<vmem>>, vector<8x128xf32>
    tpu.vector_store %arg3[%c16_106, %c0_107], %174 {strides = array<i32>} : memref<24x128xf32, #tpu.memory_space<vmem>>, vector<8x128xf32>,
    return
  }
}

</mosaic_0001>

<llo_original>
// kernel: _policy_step.1
$region0: #{_policy_step.1}
  #allocation0 [shape = 'u32[]', space=smem, size = 0x4, offset = 0x4, fixed_abs, tag = 'smem constant byte address 0x4 - core index']
  #allocation1 [shape = 'u32[144,128]{1,0:T(1,128)}', space=vmem, size = 0x12000, scoped, tag = 'internal scratch']
  %s0 = inlined_call_operand.vmem [shape: f32[8,128], index: 0, kind: input, shape index: {}]
  %s1 = inlined_call_operand.hbm [shape: f32[17,128,128], index: 1, kind: input, shape index: {}]
  %s2 = inlined_call_operand.hbm [shape: f32[40,128], index: 2, kind: input, shape index: {}]
  %s3 = inlined_call_operand.vmem [shape: f32[24,128], index: 3, kind: output, shape index: {}]
  %s4 = sld [smem:[#allocation0]]
  $region30: #{_policy_step.1} parent=0
    _
  %s6 = ssub.s32 1, %s4
  %s7 = scalar_select 0, %s6, %s4
  $region1: #{_policy_step.1} parent=0
    #allocation2 [shape = 'u8[1114112]{0}', space=vmem, size = 0x110000, scoped, tag = 'input window, operand 1, single buffered']
    #allocation3 [shape = 's32[1]{0}', space=sflag, size = 0x4, scoped, tag = 'scoped memory for _policy_step.1']
    #allocation4 [shape = 'u8[20480]{0}', space=vmem, size = 0x5000, scoped, tag = 'input window, operand 2, single buffered']
    #allocation5 [shape = 's32[1]{0}', space=sflag, size = 0x4, scoped, tag = 'scoped memory for _policy_step.1']
    %8 = vsyncpa [#allocation3], 0
    %9 = vsyncpa [#allocation5], 0
    // Predicated region
    $region2: #{_policy_step.1} parent=1 // pred_check
      _
    $region3: #{_policy_step.1} parent=1 // pred_check_branch
      %11 = sbr.rel (0) target = $region5
    $region4: #{_policy_step.1} parent=1 // pred_region
      _
    $region5: #{_policy_step.1} parent=1 // pred_fallthru
      _
    // Predicated region
    $region6: #{_policy_step.1} parent=1 // pred_check
      _
    $region7: #{_policy_step.1} parent=1 // pred_check_branch
      %13 = sbr.rel (0) target = $region9
    $region8: #{_policy_step.1} parent=1 // pred_region
      %s15 = ssub.s32 34816, 34816
      %16 = vsyncadd [#allocation3], %s15
      %s17 = sshll.u32 [#allocation2], 4
      %s18 = int_to_ptr.vmem [resolvable:$true] %s17
      %23 = dma.hbm_to_vmem [thread:$0]  %s1, 34816, %s18, [#allocation3], 128, 128, 8
    $region9: #{_policy_step.1} parent=1 // pred_fallthru
      _
    // Predicated region
    $region10: #{_policy_step.1} parent=1 // pred_check
      _
    $region11: #{_policy_step.1} parent=1 // pred_check_branch
      %25 = sbr.rel (0) target = $region13
    $region12: #{_policy_step.1} parent=1 // pred_region
      %s27 = ssub.s32 640, 640
      %28 = vsyncadd [#allocation5], %s27
      %s29 = sshll.u32 [#allocation4], 4
      %s30 = int_to_ptr.vmem [resolvable:$true] %s29
      %35 = dma.hbm_to_vmem [thread:$0]  %s2, 640, %s30, [#allocation5], 128, 128, 8
    $region13: #{_policy_step.1} parent=1 // pred_fallthru
      _
    // Predicated region
    $region14: #{_policy_step.1} parent=1 // pred_check
      _
    $region15: #{_policy_step.1} parent=1 // pred_check_branch
      %37 = sbr.rel (0) target = $region17
    $region16: #{_policy_step.1} parent=1 // pred_region
      %38 = dma.done [#allocation3], 34816
    $region17: #{_policy_step.1} parent=1 // pred_fallthru
      _
    // Predicated region
    $region18: #{_policy_step.1} parent=1 // pred_check
      _
    $region19: #{_policy_step.1} parent=1 // pred_check_branch
      %40 = sbr.rel (0) target = $region21
    $region20: #{_policy_step.1} parent=1 // pred_region
      %41 = dma.done [#allocation5], 640
    $region21: #{_policy_step.1} parent=1 // pred_fallthru
      _
    %v42 = vld [vmem:[%s0] sm:$0x1]
    %v43 = vld [vmem:[#allocation2] sm:$0xff]
    %v44 = vld [vmem:[#allocation2 + $0x8] sm:$0xff]
    %v45 = vld [vmem:[#allocation2 + $0x10] sm:$0xff]
    %v46 = vld [vmem:[#allocation2 + $0x18] sm:$0xff]
    %v47 = vld [vmem:[#allocation2 + $0x20] sm:$0xff]
    %v48 = vld [vmem:[#allocation2 + $0x28] sm:$0xff]
    %v49 = vld [vmem:[#allocation2 + $0x30] sm:$0xff]
    %v50 = vld [vmem:[#allocation2 + $0x38] sm:$0xff]
    %v51 = vld [vmem:[#allocation2 + $0x40] sm:$0xff]
    %v52 = vld [vmem:[#allocation2 + $0x48] sm:$0xff]
    %v53 = vld [vmem:[#allocation2 + $0x50] sm:$0xff]
    %v54 = vld [vmem:[#allocation2 + $0x58] sm:$0xff]
    %v55 = vld [vmem:[#allocation2 + $0x60] sm:$0xff]
    %v56 = vld [vmem:[#allocation2 + $0x68] sm:$0xff]
    %v57 = vld [vmem:[#allocation2 + $0x70] sm:$0xff]
    %v58 = vld [vmem:[#allocation2 + $0x78] sm:$0xff]
    %v59 = vld [vmem:[#allocation4] sm:$0x1]
    %60 = vmatprep.subr.mxu0 0.0
    %61 = vmatpush1.msra.mxu0 %v43
    %62 = vmatprep.subr.mxu0 0.0
    %63 = vmatpush1.msra.mxu0 %v44
    %64 = vmatprep.subr.mxu0 0.0
    %65 = vmatpush1.msra.mxu0 %v45
    %66 = vmatprep.subr.mxu0 0.0
    %67 = vmatpush1.msra.mxu0 %v46
    %68 = vmatprep.subr.mxu0 0.0
    %69 = vmatpush1.msra.mxu0 %v47
    %70 = vmatprep.subr.mxu0 0.0
    %71 = vmatpush1.msra.mxu0 %v48
    %72 = vmatprep.subr.mxu0 0.0
    %73 = vmatpush1.msra.mxu0 %v49
    %74 = vmatprep.subr.mxu0 0.0
    %75 = vmatpush1.msra.mxu0 %v50
    %76 = vmatprep.subr.mxu0 0.0
    %77 = vmatpush1.msra.mxu0 %v51
    %78 = vmatprep.subr.mxu0 0.0
    %79 = vmatpush1.msra.mxu0 %v52
    %80 = vmatprep.subr.mxu0 0.0
    %81 = vmatpush1.msra.mxu0 %v53
    %82 = vmatprep.subr.mxu0 0.0
    %83 = vmatpush1.msra.mxu0 %v54
    %84 = vmatprep.subr.mxu0 0.0
    %85 = vmatpush1.msra.mxu0 %v55
    %86 = vmatprep.subr.mxu0 0.0
    %87 = vmatpush1.msra.mxu0 %v56
    %88 = vmatprep.subr.mxu0 0.0
    %89 = vmatpush1.msra.mxu0 %v57
    %90 = vmatprep.subr.mxu0 0.0
    %91 = vmatpush1.msra.mxu0 %v58
    %92 = vmatprep.subr.mxu0 0.0
    %93 = vmatpush1.msra.mxu0 0.0
    %94 = vmatprep.subr.mxu0 0.0
    %95 = vmatpush1.msra.mxu0 0.0
    %96 = vmatprep.subr.mxu0 0.0
    %97 = vmatpush1.msra.mxu0 0.0
    %98 = vmatprep.subr.mxu0 0.0
    %99 = vmatpush1.msra.mxu0 0.0
    %100 = vmatprep.subr.mxu0 0.0
    %101 = vmatpush1.msra.mxu0 0.0
    %102 = vmatprep.subr.mxu0 0.0
    %103 = vmatpush1.msra.mxu0 0.0
    %104 = vmatprep.subr.mxu0 0.0
    %105 = vmatpush1.msra.mxu0 0.0
    %106 = vmatprep.subr.mxu0 0.0
    %107 = vmatpush1.msra.mxu0 0.0
    %108 = vmatprep.subr.mxu0 0.0
    %109 = vmatpush1.msra.mxu0 0.0
    %110 = vmatprep.subr.mxu0 0.0
    %111 = vmatpush1.msra.mxu0 0.0
    %112 = vmatprep.subr.mxu0 0.0
    %113 = vmatpush1.msra.mxu0 0.0
    %114 = vmatprep.subr.mxu0 0.0
    %115 = vmatpush1.msra.mxu0 0.0
    %116 = vmatprep.subr.mxu0 0.0
    %117 = vmatpush1.msra.mxu0 0.0
    %118 = vmatprep.subr.mxu0 0.0
    %119 = vmatpush1.msra.mxu0 0.0
    %120 = vmatprep.subr.mxu0 0.0
    %121 = vmatpush1.msra.mxu0 0.0
    %122 = vmatprep.subr.mxu0 0.0
    %123 = vmatpush1.msra.mxu0 0.0
    %124 = vmatprep.mubr.f32.mxu0 0.0
    %125 = vmatmul.mubr.f32.gmra.mrb[0].mxu0 %v42
    %v126 = vpop.f32.mrb[0].mxu0
    %v127 = vadd.f32 %v59, %v126
    %v128 = vpop.f32.mrb[0].mxu0
    %129 = vdwg.mxu0
    %v130 = vmax.f32 %v127, 0.0
    %v131 = vlaneseq
    %v132 = vand.u32 %v131, 127
    %v133 = vld [vmem:[#allocation4 + $0x10] sm:$0xff]
    %s134 = scalar_lea.vmem [#allocation2], 128
    %v135 = vld [vmem:[%s134] sm:$0xff]
    %v136 = vld [vmem:[%s134 + $0x8] sm:$0xff]
    %v137 = vld [vmem:[%s134 + $0x10] sm:$0xff]
    %v138 = vld [vmem:[%s134 + $0x18] sm:$0xff]
    %v139 = vld [vmem:[%s134 + $0x20] sm:$0xff]
    %v140 = vld [vmem:[%s134 + $0x28] sm:$0xff]
    %v141 = vld [vmem:[%s134 + $0x30] sm:$0xff]
    %v142 = vld [vmem:[%s134 + $0x38] sm:$0xff]
    %v143 = vld [vmem:[%s134 + $0x40] sm:$0xff]
    %v144 = vld [vmem:[%s134 + $0x48] sm:$0xff]
    %v145 = vld [vmem:[%s134 + $0x50] sm:$0xff]
    %v146 = vld [vmem:[%s134 + $0x58] sm:$0xff]
    %v147 = vld [vmem:[%s134 + $0x60] sm:$0xff]
    %v148 = vld [vmem:[%s134 + $0x68] sm:$0xff]
    %v149 = vld [vmem:[%s134 + $0x70] sm:$0xff]
    %v150 = vld [vmem:[%s134 + $0x78] sm:$0xff]
    %s151 = scalar_lea.vmem [#allocation2], 256
    %v152 = vld [vmem:[%s151] sm:$0xff]
    %v153 = vld [vmem:[%s151 + $0x8] sm:$0xff]
    %v154 = vld [vmem:[%s151 + $0x10] sm:$0xff]
    %v155 = vld [vmem:[%s151 + $0x18] sm:$0xff]
    %v156 = vld [vmem:[%s151 + $0x20] sm:$0xff]
    %v157 = vld [vmem:[%s151 + $0x28] sm:$0xff]
    %v158 = vld [vmem:[%s151 + $0x30] sm:$0xff]
    %v159 = vld [vmem:[%s151 + $0x38] sm:$0xff]
    %v160 = vld [vmem:[%s151 + $0x40] sm:$0xff]
    %v161 = vld [vmem:[%s151 + $0x48] sm:$0xff]
    %v162 = vld [vmem:[%s151 + $0x50] sm:$0xff]
    %v163 = vld [vmem:[%s151 + $0x58] sm:$0xff]
    %v164 = vld [vmem:[%s151 + $0x60] sm:$0xff]
    %v165 = vld [vmem:[%s151 + $0x68] sm:$0xff]
    %v166 = vld [vmem:[%s151 + $0x70] sm:$0xff]
    %v167 = vld [vmem:[%s151 + $0x78] sm:$0xff]
    %168 = vmatprep.subr.mxu0 0.0
    %169 = vmatpush1.msra.mxu0 %v152
    %170 = vmatprep.subr.mxu0 0.0
    %171 = vmatpush1.msra.mxu0 %v153
    %172 = vmatprep.subr.mxu0 0.0
    %173 = vmatpush1.msra.mxu0 %v154
    %174 = vmatprep.subr.mxu0 0.0
    %175 = vmatpush1.msra.mxu0 %v155
    %176 = vmatprep.subr.mxu0 0.0
    %177 = vmatpush1.msra.mxu0 %v156
    %178 = vmatprep.subr.mxu0 0.0
    %179 = vmatpush1.msra.mxu0 %v157
    %180 = vmatprep.subr.mxu0 0.0
    %181 = vmatpush1.msra.mxu0 %v158
    %182 = vmatprep.subr.mxu0 0.0
    %183 = vmatpush1.msra.mxu0 %v159
    %184 = vmatprep.subr.mxu0 0.0
    %185 = vmatpush1.msra.mxu0 %v160
    %186 = vmatprep.subr.mxu0 0.0
    %187 = vmatpush1.msra.mxu0 %v161
    %188 = vmatprep.subr.mxu0 0.0
    %189 = vmatpush1.msra.mxu0 %v162
    %190 = vmatprep.subr.mxu0 0.0
    %191 = vmatpush1.msra.mxu0 %v163
    %192 = vmatprep.subr.mxu0 0.0
    %193 = vmatpush1.msra.mxu0 %v164
    %194 = vmatprep.subr.mxu0 0.0
    %195 = vmatpush1.msra.mxu0 %v165
    %196 = vmatprep.subr.mxu0 0.0
    %197 = vmatpush1.msra.mxu0 %v166
    %198 = vmatprep.subr.mxu0 0.0
    %199 = vmatpush1.msra.mxu0 %v167
    %200 = vmatprep.subr.mxu0 0.0
    %201 = vmatpush1.msra.mxu0 0.0
    %202 = vmatprep.subr.mxu0 0.0
    %203 = vmatpush1.msra.mxu0 0.0
    %204 = vmatprep.subr.mxu0 0.0
    %205 = vmatpush1.msra.mxu0 0.0
    %206 = vmatprep.subr.mxu0 0.0
    %207 = vmatpush1.msra.mxu0 0.0
    %208 = vmatprep.subr.mxu0 0.0
    %209 = vmatpush1.msra.mxu0 0.0
    %210 = vmatprep.subr.mxu0 0.0
    %211 = vmatpush1.msra.mxu0 0.0
    %212 = vmatprep.subr.mxu0 0.0
    %213 = vmatpush1.msra.mxu0 0.0
    %214 = vmatprep.subr.mxu0 0.0
    %215 = vmatpush1.msra.mxu0 0.0
    %216 = vmatprep.subr.mxu0 0.0
    %217 = vmatpush1.msra.mxu0 0.0
    %218 = vmatprep.subr.mxu0 0.0
    %219 = vmatpush1.msra.mxu0 0.0
    %220 = vmatprep.subr.mxu0 0.0
    %221 = vmatpush1.msra.mxu0 0.0
    %222 = vmatprep.subr.mxu0 0.0
    %223 = vmatpush1.msra.mxu0 0.0
    %224 = vmatprep.subr.mxu0 0.0
    %225 = vmatpush1.msra.mxu0 0.0
    %226 = vmatprep.subr.mxu0 0.0
    %227 = vmatpush1.msra.mxu0 0.0
    %228 = vmatprep.subr.mxu0 0.0
    %229 = vmatpush1.msra.mxu0 0.0
    %230 = vmatprep.subr.mxu0 0.0
    %231 = vmatpush1.msra.mxu0 0.0
    %232 = vmatprep.mubr.f32.mxu0 0.0
    %233 = vmatmul.mubr.f32.gmra.mrb[0].mxu0 %v130
    %v234 = vpop.f32.mrb[0].mxu0
    %v235 = vadd.f32 0.0, %v234
    %v236 = vpop.f32.mrb[0].mxu0
    %237 = vdwg.mxu0
    %v238 = vlaneseq
    %v239 = vshrl.u32 %v238, 7
    %v240 = vsub.s32 0, %v239
    %v241 = vrot.slane %v235, %v240
    %242 = vmatprep.subr.mxu0 0.0
    %243 = vmatpush1.msra.mxu0 %v135
    %244 = vmatprep.subr.mxu0 0.0
    %245 = vmatpush1.msra.mxu0 %v136
    %246 = vmatprep.subr.mxu0 0.0
    %247 = vmatpush1.msra.mxu0 %v137
    %248 = vmatprep.subr.mxu0 0.0
    %249 = vmatpush1.msra.mxu0 %v138
    %250 = vmatprep.subr.mxu0 0.0
    %251 = vmatpush1.msra.mxu0 %v139
    %252 = vmatprep.subr.mxu0 0.0
    %253 = vmatpush1.msra.mxu0 %v140
    %254 = vmatprep.subr.mxu0 0.0
    %255 = vmatpush1.msra.mxu0 %v141
    %256 = vmatprep.subr.mxu0 0.0
    %257 = vmatpush1.msra.mxu0 %v142
    %258 = vmatprep.subr.mxu0 0.0
    %259 = vmatpush1.msra.mxu0 %v143
    %260 = vmatprep.subr.mxu0 0.0
    %261 = vmatpush1.msra.mxu0 %v144
    %262 = vmatprep.subr.mxu0 0.0
    %263 = vmatpush1.msra.mxu0 %v145
    %264 = vmatprep.subr.mxu0 0.0
    %265 = vmatpush1.msra.mxu0 %v146
    %266 = vmatprep.subr.mxu0 0.0
    %267 = vmatpush1.msra.mxu0 %v147
    %268 = vmatprep.subr.mxu0 0.0
    %269 = vmatpush1.msra.mxu0 %v148
    %270 = vmatprep.subr.mxu0 0.0
    %271 = vmatpush1.msra.mxu0 %v149
    %272 = vmatprep.subr.mxu0 0.0
    %273 = vmatpush1.msra.mxu0 %v150
    %274 = vmatprep.subr.mxu0 0.0
    %275 = vmatpush1.msra.mxu0 0.0
    %276 = vmatprep.subr.mxu0 0.0
    %277 = vmatpush1.msra.mxu0 0.0
    %278 = vmatprep.subr.mxu0 0.0
    %279 = vmatpush1.msra.mxu0 0.0
    %280 = vmatprep.subr.mxu0 0.0
    %281 = vmatpush1.msra.mxu0 0.0
    %282 = vmatprep.subr.mxu0 0.0
    %283 = vmatpush1.msra.mxu0 0.0
    %284 = vmatprep.subr.mxu0 0.0
    %285 = vmatpush1.msra.mxu0 0.0
    %286 = vmatprep.subr.mxu0 0.0
    %287 = vmatpush1.msra.mxu0 0.0
    %288 = vmatprep.subr.mxu0 0.0
    %289 = vmatpush1.msra.mxu0 0.0
    %290 = vmatprep.subr.mxu0 0.0
    %291 = vmatpush1.msra.mxu0 0.0
    %292 = vmatprep.subr.mxu0 0.0
    %293 = vmatpush1.msra.mxu0 0.0
    %294 = vmatprep.subr.mxu0 0.0
    %295 = vmatpush1.msra.mxu0 0.0
    %296 = vmatprep.subr.mxu0 0.0
    %297 = vmatpush1.msra.mxu0 0.0
    %298 = vmatprep.subr.mxu0 0.0
    %299 = vmatpush1.msra.mxu0 0.0
    %300 = vmatprep.subr.mxu0 0.0
    %301 = vmatpush1.msra.mxu0 0.0
    %302 = vmatprep.subr.mxu0 0.0
    %303 = vmatpush1.msra.mxu0 0.0
    %304 = vmatprep.subr.mxu0 0.0
    %305 = vmatpush1.msra.mxu0 0.0
    %306 = vmatprep.mubr.f32.mxu0 0.0
    %307 = vmatmul.mubr.f32.gmra.mrb[0].mxu0 %v133
    %v308 = vpop.f32.mrb[0].mxu0
    %v309 = vadd.f32 %v241, %v308
    %v310 = vpop.f32.mrb[0].mxu0
    %311 = vdwg.mxu0
    %v312 = vld [vmem:[#allocation4 + $0x1] sm:$0x1]
    %v313 = vlaneseq
    %v314 = vshrl.u32 %v313, 7
    %v315 = vsub.s32 0, %v314
    %v316 = vrot.slane %v312, %v315
    %v317 = vadd.f32 %v309, %v316
    %s318 = scalar_lea.vmem [#allocation2], 384
    %v319 = vld [vmem:[%s318] sm:$0xff]
    %v320 = vld [vmem:[%s318 + $0x8] sm:$0xff]
    %v321 = vld [vmem:[%s318 + $0x10] sm:$0xff]
    %v322 = vld [vmem:[%s318 + $0x18] sm:$0xff]
    %v323 = vld [vmem:[%s318 + $0x20] sm:$0xff]
    %v324 = vld [vmem:[%s318 + $0x28] sm:$0xff]
    %v325 = vld [vmem:[%s318 + $0x30] sm:$0xff]
    %v326 = vld [vmem:[%s318 + $0x38] sm:$0xff]
    %v327 = vld [vmem:[%s318 + $0x40] sm:$0xff]
    %v328 = vld [vmem:[%s318 + $0x48] sm:$0xff]
    %v329 = vld [vmem:[%s318 + $0x50] sm:$0xff]
    %v330 = vld [vmem:[%s318 + $0x58] sm:$0xff]
    %v331 = vld [vmem:[%s318 + $0x60] sm:$0xff]
    %v332 = vld [vmem:[%s318 + $0x68] sm:$0xff]
    %v333 = vld [vmem:[%s318 + $0x70] sm:$0xff]
    %v334 = vld [vmem:[%s318 + $0x78] sm:$0xff]
    %v335 = vld [vmem:[#allocation4 + $0x2] sm:$0x1]
    %v336 = vlaneseq
    %v337 = vshrl.u32 %v336, 7
    %v338 = vsub.s32 0, %v337
    %v339 = vrot.slane %v335, %v338
    %340 = vmatprep.subr.mxu0 0.0
    %341 = vmatpush1.msra.mxu0 %v319
    %342 = vmatprep.subr.mxu0 0.0
    %343 = vmatpush1.msra.mxu0 %v320
    %344 = vmatprep.subr.mxu0 0.0
    %345 = vmatpush1.msra.mxu0 %v321
    %346 = vmatprep.subr.mxu0 0.0
    %347 = vmatpush1.msra.mxu0 %v322
    %348 = vmatprep.subr.mxu0 0.0
    %349 = vmatpush1.msra.mxu0 %v323
    %350 = vmatprep.subr.mxu0 0.0
    %351 = vmatpush1.msra.mxu0 %v324
    %352 = vmatprep.subr.mxu0 0.0
    %353 = vmatpush1.msra.mxu0 %v325
    %354 = vmatprep.subr.mxu0 0.0
    %355 = vmatpush1.msra.mxu0 %v326
    %356 = vmatprep.subr.mxu0 0.0
    %357 = vmatpush1.msra.mxu0 %v327
    %358 = vmatprep.subr.mxu0 0.0
    %359 = vmatpush1.msra.mxu0 %v328
    %360 = vmatprep.subr.mxu0 0.0
    %361 = vmatpush1.msra.mxu0 %v329
    %362 = vmatprep.subr.mxu0 0.0
    %363 = vmatpush1.msra.mxu0 %v330
    %364 = vmatprep.subr.mxu0 0.0
    %365 = vmatpush1.msra.mxu0 %v331
    %366 = vmatprep.subr.mxu0 0.0
    %367 = vmatpush1.msra.mxu0 %v332
    %368 = vmatprep.subr.mxu0 0.0
    %369 = vmatpush1.msra.mxu0 %v333
    %370 = vmatprep.subr.mxu0 0.0
    %371 = vmatpush1.msra.mxu0 %v334
    %372 = vmatprep.subr.mxu0 0.0
    %373 = vmatpush1.msra.mxu0 0.0
    %374 = vmatprep.subr.mxu0 0.0
    %375 = vmatpush1.msra.mxu0 0.0
    %376 = vmatprep.subr.mxu0 0.0
    %377 = vmatpush1.msra.mxu0 0.0
    %378 = vmatprep.subr.mxu0 0.0
    %379 = vmatpush1.msra.mxu0 0.0
    %380 = vmatprep.subr.mxu0 0.0
    %381 = vmatpush1.msra.mxu0 0.0
    %382 = vmatprep.subr.mxu0 0.0
    %383 = vmatpush1.msra.mxu0 0.0
    %384 = vmatprep.subr.mxu0 0.0
    %385 = vmatpush1.msra.mxu0 0.0
    %386 = vmatprep.subr.mxu0 0.0
    %387 = vmatpush1.msra.mxu0 0.0
    %388 = vmatprep.subr.mxu0 0.0
    %389 = vmatpush1.msra.mxu0 0.0
    %390 = vmatprep.subr.mxu0 0.0
    %391 = vmatpush1.msra.mxu0 0.0
    %392 = vmatprep.subr.mxu0 0.0
    %393 = vmatpush1.msra.mxu0 0.0
    %394 = vmatprep.subr.mxu0 0.0
    %395 = vmatpush1.msra.mxu0 0.0
    %396 = vmatprep.subr.mxu0 0.0
    %397 = vmatpush1.msra.mxu0 0.0
    %398 = vmatprep.subr.mxu0 0.0
    %399 = vmatpush1.msra.mxu0 0.0
    %400 = vmatprep.subr.mxu0 0.0
    %401 = vmatpush1.msra.mxu0 0.0
    %402 = vmatprep.subr.mxu0 0.0
    %403 = vmatpush1.msra.mxu0 0.0
    %404 = vmatprep.mubr.f32.mxu0 0.0
    %405 = vmatmul.mubr.f32.gmra.mrb[0].mxu0 %v317
    %v406 = vpop.f32.mrb[0].mxu0
    %v407 = vadd.f32 %v339, %v406
    %v408 = vpop.f32.mrb[0].mxu0
    %409 = vdwg.mxu0
    %v410 = vmax.f32 %v407, 0.0
    %s411 = scalar_lea.vmem [#allocation2], 512
    %v412 = vld [vmem:[%s411] sm:$0xff]
    %v413 = vld [vmem:[%s411 + $0x8] sm:$0xff]
    %v414 = vld [vmem:[%s411 + $0x10] sm:$0xff]
    %v415 = vld [vmem:[%s411 + $0x18] sm:$0xff]
    %v416 = vld [vmem:[%s411 + $0x20] sm:$0xff]
    %v417 = vld [vmem:[%s411 + $0x28] sm:$0xff]
    %v418 = vld [vmem:[%s411 + $0x30] sm:$0xff]
    %v419 = vld [vmem:[%s411 + $0x38] sm:$0xff]
    %v420 = vld [vmem:[%s411 + $0x40] sm:$0xff]
    %v421 = vld [vmem:[%s411 + $0x48] sm:$0xff]
    %v422 = vld [vmem:[%s411 + $0x50] sm:$0xff]
    %v423 = vld [vmem:[%s411 + $0x58] sm:$0xff]
    %v424 = vld [vmem:[%s411 + $0x60] sm:$0xff]
    %v425 = vld [vmem:[%s411 + $0x68] sm:$0xff]
    %v426 = vld [vmem:[%s411 + $0x70] sm:$0xff]
    %v427 = vld [vmem:[%s411 + $0x78] sm:$0xff]
    %v428 = vld [vmem:[#allocation4 + $0x3] sm:$0x1]
    %v429 = vlaneseq
    %v430 = vshrl.u32 %v429, 7
    %v431 = vsub.s32 0, %v430
    %v432 = vrot.slane %v428, %v431
    %433 = vmatprep.subr.mxu0 0.0
    %434 = vmatpush1.msra.mxu0 %v412
    %435 = vmatprep.subr.mxu0 0.0
    %436 = vmatpush1.msra.mxu0 %v413
    %437 = vmatprep.subr.mxu0 0.0
    %438 = vmatpush1.msra.mxu0 %v414
    %439 = vmatprep.subr.mxu0 0.0
    %440 = vmatpush1.msra.mxu0 %v415
    %441 = vmatprep.subr.mxu0 0.0
    %442 = vmatpush1.msra.mxu0 %v416
    %443 = vmatprep.subr.mxu0 0.0
    %444 = vmatpush1.msra.mxu0 %v417
    %445 = vmatprep.subr.mxu0 0.0
    %446 = vmatpush1.msra.mxu0 %v418
    %447 = vmatprep.subr.mxu0 0.0
    %448 = vmatpush1.msra.mxu0 %v419
    %449 = vmatprep.subr.mxu0 0.0
    %450 = vmatpush1.msra.mxu0 %v420
    %451 = vmatprep.subr.mxu0 0.0
    %452 = vmatpush1.msra.mxu0 %v421
    %453 = vmatprep.subr.mxu0 0.0
    %454 = vmatpush1.msra.mxu0 %v422
    %455 = vmatprep.subr.mxu0 0.0
    %456 = vmatpush1.msra.mxu0 %v423
    %457 = vmatprep.subr.mxu0 0.0
    %458 = vmatpush1.msra.mxu0 %v424
    %459 = vmatprep.subr.mxu0 0.0
    %460 = vmatpush1.msra.mxu0 %v425
    %461 = vmatprep.subr.mxu0 0.0
    %462 = vmatpush1.msra.mxu0 %v426
    %463 = vmatprep.subr.mxu0 0.0
    %464 = vmatpush1.msra.mxu0 %v427
    %465 = vmatprep.subr.mxu0 0.0
    %466 = vmatpush1.msra.mxu0 0.0
    %467 = vmatprep.subr.mxu0 0.0
    %468 = vmatpush1.msra.mxu0 0.0
    %469 = vmatprep.subr.mxu0 0.0
    %470 = vmatpush1.msra.mxu0 0.0
    %471 = vmatprep.subr.mxu0 0.0
    %472 = vmatpush1.msra.mxu0 0.0
    %473 = vmatprep.subr.mxu0 0.0
    %474 = vmatpush1.msra.mxu0 0.0
    %475 = vmatprep.subr.mxu0 0.0
    %476 = vmatpush1.msra.mxu0 0.0
    %477 = vmatprep.subr.mxu0 0.0
    %478 = vmatpush1.msra.mxu0 0.0
    %479 = vmatprep.subr.mxu0 0.0
    %480 = vmatpush1.msra.mxu0 0.0
    %481 = vmatprep.subr.mxu0 0.0
    %482 = vmatpush1.msra.mxu0 0.0
    %483 = vmatprep.subr.mxu0 0.0
    %484 = vmatpush1.msra.mxu0 0.0
    %485 = vmatprep.subr.mxu0 0.0
    %486 = vmatpush1.msra.mxu0 0.0
    %487 = vmatprep.subr.mxu0 0.0
    %488 = vmatpush1.msra.mxu0 0.0
    %489 = vmatprep.subr.mxu0 0.0
    %490 = vmatpush1.msra.mxu0 0.0
    %491 = vmatprep.subr.mxu0 0.0
    %492 = vmatpush1.msra.mxu0 0.0
    %493 = vmatprep.subr.mxu0 0.0
    %494 = vmatpush1.msra.mxu0 0.0
    %495 = vmatprep.subr.mxu0 0.0
    %496 = vmatpush1.msra.mxu0 0.0
    %497 = vmatprep.mubr.f32.mxu0 0.0
    %498 = vmatmul.mubr.f32.gmra.mrb[0].mxu0 %v410
    %v499 = vpop.f32.mrb[0].mxu0
    %v500 = vadd.f32 %v432, %v499
    %v501 = vpop.f32.mrb[0].mxu0
    %502 = vdwg.mxu0
    %v503 = vmax.f32 %v500, 0.0
    %v504 = vadd.f32 %v503, %v317
    %s505 = scalar_lea.vmem [#allocation2], 640
    %v506 = vld [vmem:[%s505] sm:$0xff]
    %v507 = vld [vmem:[%s505 + $0x8] sm:$0xff]
    %v508 = vld [vmem:[%s505 + $0x10] sm:$0xff]
    %v509 = vld [vmem:[%s505 + $0x18] sm:$0xff]
    %v510 = vld [vmem:[%s505 + $0x20] sm:$0xff]
    %v511 = vld [vmem:[%s505 + $0x28] sm:$0xff]
    %v512 = vld [vmem:[%s505 + $0x30] sm:$0xff]
    %v513 = vld [vmem:[%s505 + $0x38] sm:$0xff]
    %v514 = vld [vmem:[%s505 + $0x40] sm:$0xff]
    %v515 = vld [vmem:[%s505 + $0x48] sm:$0xff]
    %v516 = vld [vmem:[%s505 + $0x50] sm:$0xff]
    %v517 = vld [vmem:[%s505 + $0x58] sm:$0xff]
    %v518 = vld [vmem:[%s505 + $0x60] sm:$0xff]
    %v519 = vld [vmem:[%s505 + $0x68] sm:$0xff]
    %v520 = vld [vmem:[%s505 + $0x70] sm:$0xff]
    %v521 = vld [vmem:[%s505 + $0x78] sm:$0xff]
    %v522 = vld [vmem:[#allocation4 + $0x4] sm:$0x1]
    %v523 = vlaneseq
    %v524 = vshrl.u32 %v523, 7
    %v525 = vsub.s32 0, %v524
    %v526 = vrot.slane %v522, %v525
    %527 = vmatprep.subr.mxu0 0.0
    %528 = vmatpush1.msra.mxu0 %v506
    %529 = vmatprep.subr.mxu0 0.0
    %530 = vmatpush1.msra.mxu0 %v507
    %531 = vmatprep.subr.mxu0 0.0
    %532 = vmatpush1.msra.mxu0 %v508
    %533 = vmatprep.subr.mxu0 0.0
    %534 = vmatpush1.msra.mxu0 %v509
    %535 = vmatprep.subr.mxu0 0.0
    %536 = vmatpush1.msra.mxu0 %v510
    %537 = vmatprep.subr.mxu0 0.0
    %538 = vmatpush1.msra.mxu0 %v511
    %539 = vmatprep.subr.mxu0 0.0
    %540 = vmatpush1.msra.mxu0 %v512
    %541 = vmatprep.subr.mxu0 0.0
    %542 = vmatpush1.msra.mxu0 %v513
    %543 = vmatprep.subr.mxu0 0.0
    %544 = vmatpush1.msra.mxu0 %v514
    %545 = vmatprep.subr.mxu0 0.0
    %546 = vmatpush1.msra.mxu0 %v515
    %547 = vmatprep.subr.mxu0 0.0
    %548 = vmatpush1.msra.mxu0 %v516
    %549 = vmatprep.subr.mxu0 0.0
    %550 = vmatpush1.msra.mxu0 %v517
    %551 = vmatprep.subr.mxu0 0.0
    %552 = vmatpush1.msra.mxu0 %v518
    %553 = vmatprep.subr.mxu0 0.0
    %554 = vmatpush1.msra.mxu0 %v519
    %555 = vmatprep.subr.mxu0 0.0
    %556 = vmatpush1.msra.mxu0 %v520
    %557 = vmatprep.subr.mxu0 0.0
    %558 = vmatpush1.msra.mxu0 %v521
    %559 = vmatprep.subr.mxu0 0.0
    %560 = vmatpush1.msra.mxu0 0.0
    %561 = vmatprep.subr.mxu0 0.0
    %562 = vmatpush1.msra.mxu0 0.0
    %563 = vmatprep.subr.mxu0 0.0
    %564 = vmatpush1.msra.mxu0 0.0
    %565 = vmatprep.subr.mxu0 0.0
    %566 = vmatpush1.msra.mxu0 0.0
    %567 = vmatprep.subr.mxu0 0.0
    %568 = vmatpush1.msra.mxu0 0.0
    %569 = vmatprep.subr.mxu0 0.0
    %570 = vmatpush1.msra.mxu0 0.0
    %571 = vmatprep.subr.mxu0 0.0
    %572 = vmatpush1.msra.mxu0 0.0
    %573 = vmatprep.subr.mxu0 0.0
    %574 = vmatpush1.msra.mxu0 0.0
    %575 = vmatprep.subr.mxu0 0.0
    %576 = vmatpush1.msra.mxu0 0.0
    %577 = vmatprep.subr.mxu0 0.0
    %578 = vmatpush1.msra.mxu0 0.0
    %579 = vmatprep.subr.mxu0 0.0
    %580 = vmatpush1.msra.mxu0 0.0
    %581 = vmatprep.subr.mxu0 0.0
    %582 = vmatpush1.msra.mxu0 0.0
    %583 = vmatprep.subr.mxu0 0.0
    %584 = vmatpush1.msra.mxu0 0.0
    %585 = vmatprep.subr.mxu0 0.0
    %586 = vmatpush1.msra.mxu0 0.0
    %587 = vmatprep.subr.mxu0 0.0
    %588 = vmatpush1.msra.mxu0 0.0
    %589 = vmatprep.subr.mxu0 0.0
    %590 = vmatpush1.msra.mxu0 0.0
    %591 = vmatprep.mubr.f32.mxu0 0.0
    %592 = vmatmul.mubr.f32.gmra.mrb[0].mxu0 %v504
    %v593 = vpop.f32.mrb[0].mxu0
    %v594 = vadd.f32 %v526, %v593
    %v595 = vpop.f32.mrb[0].mxu0
    %596 = vdwg.mxu0
    %v597 = vmax.f32 %v594, 0.0
    %s598 = scalar_lea.vmem [#allocation2], 768
    %v599 = vld [vmem:[%s598] sm:$0xff]
    %v600 = vld [vmem:[%s598 + $0x8] sm:$0xff]
    %v601 = vld [vmem:[%s598 + $0x10] sm:$0xff]
    %v602 = vld [vmem:[%s598 + $0x18] sm:$0xff]
    %v603 = vld [vmem:[%s598 + $0x20] sm:$0xff]
    %v604 = vld [vmem:[%s598 + $0x28] sm:$0xff]
    %v605 = vld [vmem:[%s598 + $0x30] sm:$0xff]
    %v606 = vld [vmem:[%s598 + $0x38] sm:$0xff]
    %v607 = vld [vmem:[%s598 + $0x40] sm:$0xff]
    %v608 = vld [vmem:[%s598 + $0x48] sm:$0xff]
    %v609 = vld [vmem:[%s598 + $0x50] sm:$0xff]
    %v610 = vld [vmem:[%s598 + $0x58] sm:$0xff]
    %v611 = vld [vmem:[%s598 + $0x60] sm:$0xff]
    %v612 = vld [vmem:[%s598 + $0x68] sm:$0xff]
    %v613 = vld [vmem:[%s598 + $0x70] sm:$0xff]
    %v614 = vld [vmem:[%s598 + $0x78] sm:$0xff]
    %v615 = vld [vmem:[#allocation4 + $0x5] sm:$0x1]
    %v616 = vlaneseq
    %v617 = vshrl.u32 %v616, 7
    %v618 = vsub.s32 0, %v617
    %v619 = vrot.slane %v615, %v618
    %620 = vmatprep.subr.mxu0 0.0
    %621 = vmatpush1.msra.mxu0 %v599
    %622 = vmatprep.subr.mxu0 0.0
    %623 = vmatpush1.msra.mxu0 %v600
    %624 = vmatprep.subr.mxu0 0.0
    %625 = vmatpush1.msra.mxu0 %v601
    %626 = vmatprep.subr.mxu0 0.0
    %627 = vmatpush1.msra.mxu0 %v602
    %628 = vmatprep.subr.mxu0 0.0
    %629 = vmatpush1.msra.mxu0 %v603
    %630 = vmatprep.subr.mxu0 0.0
    %631 = vmatpush1.msra.mxu0 %v604
    %632 = vmatprep.subr.mxu0 0.0
    %633 = vmatpush1.msra.mxu0 %v605
    %634 = vmatprep.subr.mxu0 0.0
    %635 = vmatpush1.msra.mxu0 %v606
    %636 = vmatprep.subr.mxu0 0.0
    %637 = vmatpush1.msra.mxu0 %v607
    %638 = vmatprep.subr.mxu0 0.0
    %639 = vmatpush1.msra.mxu0 %v608
    %640 = vmatprep.subr.mxu0 0.0
    %641 = vmatpush1.msra.mxu0 %v609
    %642 = vmatprep.subr.mxu0 0.0
    %643 = vmatpush1.msra.mxu0 %v610
    %644 = vmatprep.subr.mxu0 0.0
    %645 = vmatpush1.msra.mxu0 %v611
    %646 = vmatprep.subr.mxu0 0.0
    %647 = vmatpush1.msra.mxu0 %v612
    %648 = vmatprep.subr.mxu0 0.0
    %649 = vmatpush1.msra.mxu0 %v613
    %650 = vmatprep.subr.mxu0 0.0
    %651 = vmatpush1.msra.mxu0 %v614
    %652 = vmatprep.subr.mxu0 0.0
    %653 = vmatpush1.msra.mxu0 0.0
    %654 = vmatprep.subr.mxu0 0.0
    %655 = vmatpush1.msra.mxu0 0.0
    %656 = vmatprep.subr.mxu0 0.0
    %657 = vmatpush1.msra.mxu0 0.0
    %658 = vmatprep.subr.mxu0 0.0
    %659 = vmatpush1.msra.mxu0 0.0
    %660 = vmatprep.subr.mxu0 0.0
    %661 = vmatpush1.msra.mxu0 0.0
    %662 = vmatprep.subr.mxu0 0.0
    %663 = vmatpush1.msra.mxu0 0.0
    %664 = vmatprep.subr.mxu0 0.0
    %665 = vmatpush1.msra.mxu0 0.0
    %666 = vmatprep.subr.mxu0 0.0
    %667 = vmatpush1.msra.mxu0 0.0
    %668 = vmatprep.subr.mxu0 0.0
    %669 = vmatpush1.msra.mxu0 0.0
    %670 = vmatprep.subr.mxu0 0.0
    %671 = vmatpush1.msra.mxu0 0.0
    %672 = vmatprep.subr.mxu0 0.0
    %673 = vmatpush1.msra.mxu0 0.0
    %674 = vmatprep.subr.mxu0 0.0
    %675 = vmatpush1.msra.mxu0 0.0
    %676 = vmatprep.subr.mxu0 0.0
    %677 = vmatpush1.msra.mxu0 0.0
    %678 = vmatprep.subr.mxu0 0.0
    %679 = vmatpush1.msra.mxu0 0.0
    %680 = vmatprep.subr.mxu0 0.0
    %681 = vmatpush1.msra.mxu0 0.0
    %682 = vmatprep.subr.mxu0 0.0
    %683 = vmatpush1.msra.mxu0 0.0
    %684 = vmatprep.mubr.f32.mxu0 0.0
    %685 = vmatmul.mubr.f32.gmra.mrb[0].mxu0 %v597
    %v686 = vpop.f32.mrb[0].mxu0
    %v687 = vadd.f32 %v619, %v686
    %v688 = vpop.f32.mrb[0].mxu0
    %689 = vdwg.mxu0
    %v690 = vmax.f32 %v687, 0.0
    %v691 = vadd.f32 %v690, %v504
    %s692 = scalar_lea.vmem [#allocation2], 896
    %v693 = vld [vmem:[%s692] sm:$0xff]
    %v694 = vld [vmem:[%s692 + $0x8] sm:$0xff]
    %v695 = vld [vmem:[%s692 + $0x10] sm:$0xff]
    %v696 = vld [vmem:[%s692 + $0x18] sm:$0xff]
    %v697 = vld [vmem:[%s692 + $0x20] sm:$0xff]
    %v698 = vld [vmem:[%s692 + $0x28] sm:$0xff]
    %v699 = vld [vmem:[%s692 + $0x30] sm:$0xff]
    %v700 = vld [vmem:[%s692 + $0x38] sm:$0xff]
    %v701 = vld [vmem:[%s692 + $0x40] sm:$0xff]
    %v702 = vld [vmem:[%s692 + $0x48] sm:$0xff]
    %v703 = vld [vmem:[%s692 + $0x50] sm:$0xff]
    %v704 = vld [vmem:[%s692 + $0x58] sm:$0xff]
    %v705 = vld [vmem:[%s692 + $0x60] sm:$0xff]
    %v706 = vld [vmem:[%s692 + $0x68] sm:$0xff]
    %v707 = vld [vmem:[%s692 + $0x70] sm:$0xff]
    %v708 = vld [vmem:[%s692 + $0x78] sm:$0xff]
    %v709 = vld [vmem:[#allocation4 + $0x6] sm:$0x1]
    %v710 = vlaneseq
    %v711 = vshrl.u32 %v710, 7
    %v712 = vsub.s32 0, %v711
    %v713 = vrot.slane %v709, %v712
    %714 = vmatprep.subr.mxu0 0.0
    %715 = vmatpush1.msra.mxu0 %v693
    %716 = vmatprep.subr.mxu0 0.0
    %717 = vmatpush1.msra.mxu0 %v694
    %718 = vmatprep.subr.mxu0 0.0
    %719 = vmatpush1.msra.mxu0 %v695
    %720 = vmatprep.subr.mxu0 0.0
    %721 = vmatpush1.msra.mxu0 %v696
    %722 = vmatprep.subr.mxu0 0.0
    %723 = vmatpush1.msra.mxu0 %v697
    %724 = vmatprep.subr.mxu0 0.0
    %725 = vmatpush1.msra.mxu0 %v698
    %726 = vmatprep.subr.mxu0 0.0
    %727 = vmatpush1.msra.mxu0 %v699
    %728 = vmatprep.subr.mxu0 0.0
    %729 = vmatpush1.msra.mxu0 %v700
    %730 = vmatprep.subr.mxu0 0.0
    %731 = vmatpush1.msra.mxu0 %v701
    %732 = vmatprep.subr.mxu0 0.0
    %733 = vmatpush1.msra.mxu0 %v702
    %734 = vmatprep.subr.mxu0 0.0
    %735 = vmatpush1.msra.mxu0 %v703
    %736 = vmatprep.subr.mxu0 0.0
    %737 = vmatpush1.msra.mxu0 %v704
    %738 = vmatprep.subr.mxu0 0.0
    %739 = vmatpush1.msra.mxu0 %v705
    %740 = vmatprep.subr.mxu0 0.0
    %741 = vmatpush1.msra.mxu0 %v706
    %742 = vmatprep.subr.mxu0 0.0
    %743 = vmatpush1.msra.mxu0 %v707
    %744 = vmatprep.subr.mxu0 0.0
    %745 = vmatpush1.msra.mxu0 %v708
    %746 = vmatprep.subr.mxu0 0.0
    %747 = vmatpush1.msra.mxu0 0.0
    %748 = vmatprep.subr.mxu0 0.0
    %749 = vmatpush1.msra.mxu0 0.0
    %750 = vmatprep.subr.mxu0 0.0
    %751 = vmatpush1.msra.mxu0 0.0
    %752 = vmatprep.subr.mxu0 0.0
    %753 = vmatpush1.msra.mxu0 0.0
    %754 = vmatprep.subr.mxu0 0.0
    %755 = vmatpush1.msra.mxu0 0.0
    %756 = vmatprep.subr.mxu0 0.0
    %757 = vmatpush1.msra.mxu0 0.0
    %758 = vmatprep.subr.mxu0 0.0
    %759 = vmatpush1.msra.mxu0 0.0
    %760 = vmatprep.subr.mxu0 0.0
    %761 = vmatpush1.msra.mxu0 0.0
    %762 = vmatprep.subr.mxu0 0.0
    %763 = vmatpush1.msra.mxu0 0.0
    %764 = vmatprep.subr.mxu0 0.0
    %765 = vmatpush1.msra.mxu0 0.0
    %766 = vmatprep.subr.mxu0 0.0
    %767 = vmatpush1.msra.mxu0 0.0
    %768 = vmatprep.subr.mxu0 0.0
    %769 = vmatpush1.msra.mxu0 0.0
    %770 = vmatprep.subr.mxu0 0.0
    %771 = vmatpush1.msra.mxu0 0.0
    %772 = vmatprep.subr.mxu0 0.0
    %773 = vmatpush1.msra.mxu0 0.0
    %774 = vmatprep.subr.mxu0 0.0
    %775 = vmatpush1.msra.mxu0 0.0
    %776 = vmatprep.subr.mxu0 0.0
    %777 = vmatpush1.msra.mxu0 0.0
    %778 = vmatprep.mubr.f32.mxu0 0.0
    %779 = vmatmul.mubr.f32.gmra.mrb[0].mxu0 %v691
    %v780 = vpop.f32.mrb[0].mxu0
    %v781 = vadd.f32 %v713, %v780
    %v782 = vpop.f32.mrb[0].mxu0
    %783 = vdwg.mxu0
    %v784 = vld [vmem:[#allocation4 + $0x18] sm:$0xff]
    %s785 = scalar_lea.vmem [#allocation2], 1024
    %v786 = vld [vmem:[%s785] sm:$0xff]
    %v787 = vld [vmem:[%s785 + $0x8] sm:$0xff]
    %v788 = vld [vmem:[%s785 + $0x10] sm:$0xff]
    %v789 = vld [vmem:[%s785 + $0x18] sm:$0xff]
    %v790 = vld [vmem:[%s785 + $0x20] sm:$0xff]
    %v791 = vld [vmem:[%s785 + $0x28] sm:$0xff]
    %v792 = vld [vmem:[%s785 + $0x30] sm:$0xff]
    %v793 = vld [vmem:[%s785 + $0x38] sm:$0xff]
    %v794 = vld [vmem:[%s785 + $0x40] sm:$0xff]
    %v795 = vld [vmem:[%s785 + $0x48] sm:$0xff]
    %v796 = vld [vmem:[%s785 + $0x50] sm:$0xff]
    %v797 = vld [vmem:[%s785 + $0x58] sm:$0xff]
    %v798 = vld [vmem:[%s785 + $0x60] sm:$0xff]
    %v799 = vld [vmem:[%s785 + $0x68] sm:$0xff]
    %v800 = vld [vmem:[%s785 + $0x70] sm:$0xff]
    %v801 = vld [vmem:[%s785 + $0x78] sm:$0xff]
    %s802 = scalar_lea.vmem [#allocation2], 1152
    %v803 = vld [vmem:[%s802] sm:$0xff]
    %v804 = vld [vmem:[%s802 + $0x8] sm:$0xff]
    %v805 = vld [vmem:[%s802 + $0x10] sm:$0xff]
    %v806 = vld [vmem:[%s802 + $0x18] sm:$0xff]
    %v807 = vld [vmem:[%s802 + $0x20] sm:$0xff]
    %v808 = vld [vmem:[%s802 + $0x28] sm:$0xff]
    %v809 = vld [vmem:[%s802 + $0x30] sm:$0xff]
    %v810 = vld [vmem:[%s802 + $0x38] sm:$0xff]
    %v811 = vld [vmem:[%s802 + $0x40] sm:$0xff]
    %v812 = vld [vmem:[%s802 + $0x48] sm:$0xff]
    %v813 = vld [vmem:[%s802 + $0x50] sm:$0xff]
    %v814 = vld [vmem:[%s802 + $0x58] sm:$0xff]
    %v815 = vld [vmem:[%s802 + $0x60] sm:$0xff]
    %v816 = vld [vmem:[%s802 + $0x68] sm:$0xff]
    %v817 = vld [vmem:[%s802 + $0x70] sm:$0xff]
    %v818 = vld [vmem:[%s802 + $0x78] sm:$0xff]
    %819 = vmatprep.subr.mxu0 0.0
    %820 = vmatpush1.msra.mxu0 %v803
    %821 = vmatprep.subr.mxu0 0.0
    %822 = vmatpush1.msra.mxu0 %v804
    %823 = vmatprep.subr.mxu0 0.0
    %824 = vmatpush1.msra.mxu0 %v805
    %825 = vmatprep.subr.mxu0 0.0
    %826 = vmatpush1.msra.mxu0 %v806
    %827 = vmatprep.subr.mxu0 0.0
    %828 = vmatpush1.msra.mxu0 %v807
    %829 = vmatprep.subr.mxu0 0.0
    %830 = vmatpush1.msra.mxu0 %v808
    %831 = vmatprep.subr.mxu0 0.0
    %832 = vmatpush1.msra.mxu0 %v809
    %833 = vmatprep.subr.mxu0 0.0
    %834 = vmatpush1.msra.mxu0 %v810
    %835 = vmatprep.subr.mxu0 0.0
    %836 = vmatpush1.msra.mxu0 %v811
    %837 = vmatprep.subr.mxu0 0.0
    %838 = vmatpush1.msra.mxu0 %v812
    %839 = vmatprep.subr.mxu0 0.0
    %840 = vmatpush1.msra.mxu0 %v813
    %841 = vmatprep.subr.mxu0 0.0
    %842 = vmatpush1.msra.mxu0 %v814
    %843 = vmatprep.subr.mxu0 0.0
    %844 = vmatpush1.msra.mxu0 %v815
    %845 = vmatprep.subr.mxu0 0.0
    %846 = vmatpush1.msra.mxu0 %v816
    %847 = vmatprep.subr.mxu0 0.0
    %848 = vmatpush1.msra.mxu0 %v817
    %849 = vmatprep.subr.mxu0 0.0
    %850 = vmatpush1.msra.mxu0 %v818
    %851 = vmatprep.subr.mxu0 0.0
    %852 = vmatpush1.msra.mxu0 0.0
    %853 = vmatprep.subr.mxu0 0.0
    %854 = vmatpush1.msra.mxu0 0.0
    %855 = vmatprep.subr.mxu0 0.0
    %856 = vmatpush1.msra.mxu0 0.0
    %857 = vmatprep.subr.mxu0 0.0
    %858 = vmatpush1.msra.mxu0 0.0
    %859 = vmatprep.subr.mxu0 0.0
    %860 = vmatpush1.msra.mxu0 0.0
    %861 = vmatprep.subr.mxu0 0.0
    %862 = vmatpush1.msra.mxu0 0.0
    %863 = vmatprep.subr.mxu0 0.0
    %864 = vmatpush1.msra.mxu0 0.0
    %865 = vmatprep.subr.mxu0 0.0
    %866 = vmatpush1.msra.mxu0 0.0
    %867 = vmatprep.subr.mxu0 0.0
    %868 = vmatpush1.msra.mxu0 0.0
    %869 = vmatprep.subr.mxu0 0.0
    %870 = vmatpush1.msra.mxu0 0.0
    %871 = vmatprep.subr.mxu0 0.0
    %872 = vmatpush1.msra.mxu0 0.0
    %873 = vmatprep.subr.mxu0 0.0
    %874 = vmatpush1.msra.mxu0 0.0
    %875 = vmatprep.subr.mxu0 0.0
    %876 = vmatpush1.msra.mxu0 0.0
    %877 = vmatprep.subr.mxu0 0.0
    %878 = vmatpush1.msra.mxu0 0.0
    %879 = vmatprep.subr.mxu0 0.0
    %880 = vmatpush1.msra.mxu0 0.0
    %881 = vmatprep.subr.mxu0 0.0
    %882 = vmatpush1.msra.mxu0 0.0
    %883 = vmatprep.mubr.f32.mxu0 0.0
    %884 = vmatmul.mubr.f32.gmra.mrb[0].mxu0 %v130
    %v885 = vpop.f32.mrb[0].mxu0
    %v886 = vadd.f32 0.0, %v885
    %v887 = vpop.f32.mrb[0].mxu0
    %888 = vdwg.mxu0
    %v889 = vlaneseq
    %v890 = vshrl.u32 %v889, 7
    %v891 = vsub.s32 0, %v890
    %v892 = vrot.slane %v886, %v891
    %893 = vmatprep.subr.mxu0 0.0
    %894 = vmatpush1.msra.mxu0 %v786
    %895 = vmatprep.subr.mxu0 0.0
    %896 = vmatpush1.msra.mxu0 %v787
    %897 = vmatprep.subr.mxu0 0.0
    %898 = vmatpush1.msra.mxu0 %v788
    %899 = vmatprep.subr.mxu0 0.0
    %900 = vmatpush1.msra.mxu0 %v789
    %901 = vmatprep.subr.mxu0 0.0
    %902 = vmatpush1.msra.mxu0 %v790
    %903 = vmatprep.subr.mxu0 0.0
    %904 = vmatpush1.msra.mxu0 %v791
    %905 = vmatprep.subr.mxu0 0.0
    %906 = vmatpush1.msra.mxu0 %v792
    %907 = vmatprep.subr.mxu0 0.0
    %908 = vmatpush1.msra.mxu0 %v793
    %909 = vmatprep.subr.mxu0 0.0
    %910 = vmatpush1.msra.mxu0 %v794
    %911 = vmatprep.subr.mxu0 0.0
    %912 = vmatpush1.msra.mxu0 %v795
    %913 = vmatprep.subr.mxu0 0.0
    %914 = vmatpush1.msra.mxu0 %v796
    %915 = vmatprep.subr.mxu0 0.0
    %916 = vmatpush1.msra.mxu0 %v797
    %917 = vmatprep.subr.mxu0 0.0
    %918 = vmatpush1.msra.mxu0 %v798
    %919 = vmatprep.subr.mxu0 0.0
    %920 = vmatpush1.msra.mxu0 %v799
    %921 = vmatprep.subr.mxu0 0.0
    %922 = vmatpush1.msra.mxu0 %v800
    %923 = vmatprep.subr.mxu0 0.0
    %924 = vmatpush1.msra.mxu0 %v801
    %925 = vmatprep.subr.mxu0 0.0
    %926 = vmatpush1.msra.mxu0 0.0
    %927 = vmatprep.subr.mxu0 0.0
    %928 = vmatpush1.msra.mxu0 0.0
    %929 = vmatprep.subr.mxu0 0.0
    %930 = vmatpush1.msra.mxu0 0.0
    %931 = vmatprep.subr.mxu0 0.0
    %932 = vmatpush1.msra.mxu0 0.0
    %933 = vmatprep.subr.mxu0 0.0
    %934 = vmatpush1.msra.mxu0 0.0
    %935 = vmatprep.subr.mxu0 0.0
    %936 = vmatpush1.msra.mxu0 0.0
    %937 = vmatprep.subr.mxu0 0.0
    %938 = vmatpush1.msra.mxu0 0.0
    %939 = vmatprep.subr.mxu0 0.0
    %940 = vmatpush1.msra.mxu0 0.0
    %941 = vmatprep.subr.mxu0 0.0
    %942 = vmatpush1.msra.mxu0 0.0
    %943 = vmatprep.subr.mxu0 0.0
    %944 = vmatpush1.msra.mxu0 0.0
    %945 = vmatprep.subr.mxu0 0.0
    %946 = vmatpush1.msra.mxu0 0.0
    %947 = vmatprep.subr.mxu0 0.0
    %948 = vmatpush1.msra.mxu0 0.0
    %949 = vmatprep.subr.mxu0 0.0
    %950 = vmatpush1.msra.mxu0 0.0
    %951 = vmatprep.subr.mxu0 0.0
    %952 = vmatpush1.msra.mxu0 0.0
    %953 = vmatprep.subr.mxu0 0.0
    %954 = vmatpush1.msra.mxu0 0.0
    %955 = vmatprep.subr.mxu0 0.0
    %956 = vmatpush1.msra.mxu0 0.0
    %957 = vmatprep.mubr.f32.mxu0 0.0
    %958 = vmatmul.mubr.f32.gmra.mrb[0].mxu0 %v784
    %v959 = vpop.f32.mrb[0].mxu0
    %v960 = vadd.f32 %v892, %v959
    %v961 = vpop.f32.mrb[0].mxu0
    %962 = vdwg.mxu0
    %v963 = vld [vmem:[#allocation4 + $0x7] sm:$0x1]
    %v964 = vlaneseq
    %v965 = vshrl.u32 %v964, 7
    %v966 = vsub.s32 0, %v965
    %v967 = vrot.slane %v963, %v966
    %v968 = vadd.f32 %v960, %v967
    %v969 = vld [vmem:[#allocation4 + $0x20] sm:$0xff]
    %s970 = scalar_lea.vmem [#allocation2], 1280
    %v971 = vld [vmem:[%s970] sm:$0xff]
    %v972 = vld [vmem:[%s970 + $0x8] sm:$0xff]
    %v973 = vld [vmem:[%s970 + $0x10] sm:$0xff]
    %v974 = vld [vmem:[%s970 + $0x18] sm:$0xff]
    %v975 = vld [vmem:[%s970 + $0x20] sm:$0xff]
    %v976 = vld [vmem:[%s970 + $0x28] sm:$0xff]
    %v977 = vld [vmem:[%s970 + $0x30] sm:$0xff]
    %v978 = vld [vmem:[%s970 + $0x38] sm:$0xff]
    %v979 = vld [vmem:[%s970 + $0x40] sm:$0xff]
    %v980 = vld [vmem:[%s970 + $0x48] sm:$0xff]
    %v981 = vld [vmem:[%s970 + $0x50] sm:$0xff]
    %v982 = vld [vmem:[%s970 + $0x58] sm:$0xff]
    %v983 = vld [vmem:[%s970 + $0x60] sm:$0xff]
    %v984 = vld [vmem:[%s970 + $0x68] sm:$0xff]
    %v985 = vld [vmem:[%s970 + $0x70] sm:$0xff]
    %v986 = vld [vmem:[%s970 + $0x78] sm:$0xff]
    %s987 = scalar_lea.vmem [#allocation2], 1408
    %v988 = vld [vmem:[%s987] sm:$0xff]
    %v989 = vld [vmem:[%s987 + $0x8] sm:$0xff]
    %v990 = vld [vmem:[%s987 + $0x10] sm:$0xff]
    %v991 = vld [vmem:[%s987 + $0x18] sm:$0xff]
    %v992 = vld [vmem:[%s987 + $0x20] sm:$0xff]
    %v993 = vld [vmem:[%s987 + $0x28] sm:$0xff]
    %v994 = vld [vmem:[%s987 + $0x30] sm:$0xff]
    %v995 = vld [vmem:[%s987 + $0x38] sm:$0xff]
    %v996 = vld [vmem:[%s987 + $0x40] sm:$0xff]
    %v997 = vld [vmem:[%s987 + $0x48] sm:$0xff]
    %v998 = vld [vmem:[%s987 + $0x50] sm:$0xff]
    %v999 = vld [vmem:[%s987 + $0x58] sm:$0xff]
    %v1000 = vld [vmem:[%s987 + $0x60] sm:$0xff]
    %v1001 = vld [vmem:[%s987 + $0x68] sm:$0xff]
    %v1002 = vld [vmem:[%s987 + $0x70] sm:$0xff]
    %v1003 = vld [vmem:[%s987 + $0x78] sm:$0xff]
    %1004 = vmatprep.subr.mxu0 0.0
    %1005 = vmatpush1.msra.mxu0 %v988
    %1006 = vmatprep.subr.mxu0 0.0
    %1007 = vmatpush1.msra.mxu0 %v989
    %1008 = vmatprep.subr.mxu0 0.0
    %1009 = vmatpush1.msra.mxu0 %v990
    %1010 = vmatprep.subr.mxu0 0.0
    %1011 = vmatpush1.msra.mxu0 %v991
    %1012 = vmatprep.subr.mxu0 0.0
    %1013 = vmatpush1.msra.mxu0 %v992
    %1014 = vmatprep.subr.mxu0 0.0
    %1015 = vmatpush1.msra.mxu0 %v993
    %1016 = vmatprep.subr.mxu0 0.0
    %1017 = vmatpush1.msra.mxu0 %v994
    %1018 = vmatprep.subr.mxu0 0.0
    %1019 = vmatpush1.msra.mxu0 %v995
    %1020 = vmatprep.subr.mxu0 0.0
    %1021 = vmatpush1.msra.mxu0 %v996
    %1022 = vmatprep.subr.mxu0 0.0
    %1023 = vmatpush1.msra.mxu0 %v997
    %1024 = vmatprep.subr.mxu0 0.0
    %1025 = vmatpush1.msra.mxu0 %v998
    %1026 = vmatprep.subr.mxu0 0.0
    %1027 = vmatpush1.msra.mxu0 %v999
    %1028 = vmatprep.subr.mxu0 0.0
    %1029 = vmatpush1.msra.mxu0 %v1000
    %1030 = vmatprep.subr.mxu0 0.0
    %1031 = vmatpush1.msra.mxu0 %v1001
    %1032 = vmatprep.subr.mxu0 0.0
    %1033 = vmatpush1.msra.mxu0 %v1002
    %1034 = vmatprep.subr.mxu0 0.0
    %1035 = vmatpush1.msra.mxu0 %v1003
    %1036 = vmatprep.subr.mxu0 0.0
    %1037 = vmatpush1.msra.mxu0 0.0
    %1038 = vmatprep.subr.mxu0 0.0
    %1039 = vmatpush1.msra.mxu0 0.0
    %1040 = vmatprep.subr.mxu0 0.0
    %1041 = vmatpush1.msra.mxu0 0.0
    %1042 = vmatprep.subr.mxu0 0.0
    %1043 = vmatpush1.msra.mxu0 0.0
    %1044 = vmatprep.subr.mxu0 0.0
    %1045 = vmatpush1.msra.mxu0 0.0
    %1046 = vmatprep.subr.mxu0 0.0
    %1047 = vmatpush1.msra.mxu0 0.0
    %1048 = vmatprep.subr.mxu0 0.0
    %1049 = vmatpush1.msra.mxu0 0.0
    %1050 = vmatprep.subr.mxu0 0.0
    %1051 = vmatpush1.msra.mxu0 0.0
    %1052 = vmatprep.subr.mxu0 0.0
    %1053 = vmatpush1.msra.mxu0 0.0
    %1054 = vmatprep.subr.mxu0 0.0
    %1055 = vmatpush1.msra.mxu0 0.0
    %1056 = vmatprep.subr.mxu0 0.0
    %1057 = vmatpush1.msra.mxu0 0.0
    %1058 = vmatprep.subr.mxu0 0.0
    %1059 = vmatpush1.msra.mxu0 0.0
    %1060 = vmatprep.subr.mxu0 0.0
    %1061 = vmatpush1.msra.mxu0 0.0
    %1062 = vmatprep.subr.mxu0 0.0
    %1063 = vmatpush1.msra.mxu0 0.0
    %1064 = vmatprep.subr.mxu0 0.0
    %1065 = vmatpush1.msra.mxu0 0.0
    %1066 = vmatprep.subr.mxu0 0.0
    %1067 = vmatpush1.msra.mxu0 0.0
    %1068 = vmatprep.mubr.f32.mxu0 0.0
    %1069 = vmatmul.mubr.f32.gmra.mrb[0].mxu0 %v130
    %v1070 = vpop.f32.mrb[0].mxu0
    %v1071 = vadd.f32 0.0, %v1070
    %v1072 = vpop.f32.mrb[0].mxu0
    %1073 = vdwg.mxu0
    %v1074 = vlaneseq
    %v1075 = vshrl.u32 %v1074, 7
    %v1076 = vsub.s32 0, %v1075
    %v1077 = vrot.slane %v1071, %v1076
    %1078 = vmatprep.subr.mxu0 0.0
    %1079 = vmatpush1.msra.mxu0 %v971
    %1080 = vmatprep.subr.mxu0 0.0
    %1081 = vmatpush1.msra.mxu0 %v972
    %1082 = vmatprep.subr.mxu0 0.0
    %1083 = vmatpush1.msra.mxu0 %v973
    %1084 = vmatprep.subr.mxu0 0.0
    %1085 = vmatpush1.msra.mxu0 %v974
    %1086 = vmatprep.subr.mxu0 0.0
    %1087 = vmatpush1.msra.mxu0 %v975
    %1088 = vmatprep.subr.mxu0 0.0
    %1089 = vmatpush1.msra.mxu0 %v976
    %1090 = vmatprep.subr.mxu0 0.0
    %1091 = vmatpush1.msra.mxu0 %v977
    %1092 = vmatprep.subr.mxu0 0.0
    %1093 = vmatpush1.msra.mxu0 %v978
    %1094 = vmatprep.subr.mxu0 0.0
    %1095 = vmatpush1.msra.mxu0 %v979
    %1096 = vmatprep.subr.mxu0 0.0
    %1097 = vmatpush1.msra.mxu0 %v980
    %1098 = vmatprep.subr.mxu0 0.0
    %1099 = vmatpush1.msra.mxu0 %v981
    %1100 = vmatprep.subr.mxu0 0.0
    %1101 = vmatpush1.msra.mxu0 %v982
    %1102 = vmatprep.subr.mxu0 0.0
    %1103 = vmatpush1.msra.mxu0 %v983
    %1104 = vmatprep.subr.mxu0 0.0
    %1105 = vmatpush1.msra.mxu0 %v984
    %1106 = vmatprep.subr.mxu0 0.0
    %1107 = vmatpush1.msra.mxu0 %v985
    %1108 = vmatprep.subr.mxu0 0.0
    %1109 = vmatpush1.msra.mxu0 %v986
    %1110 = vmatprep.subr.mxu0 0.0
    %1111 = vmatpush1.msra.mxu0 0.0
    %1112 = vmatprep.subr.mxu0 0.0
    %1113 = vmatpush1.msra.mxu0 0.0
    %1114 = vmatprep.subr.mxu0 0.0
    %1115 = vmatpush1.msra.mxu0 0.0
    %1116 = vmatprep.subr.mxu0 0.0
    %1117 = vmatpush1.msra.mxu0 0.0
    %1118 = vmatprep.subr.mxu0 0.0
    %1119 = vmatpush1.msra.mxu0 0.0
    %1120 = vmatprep.subr.mxu0 0.0
    %1121 = vmatpush1.msra.mxu0 0.0
    %1122 = vmatprep.subr.mxu0 0.0
    %1123 = vmatpush1.msra.mxu0 0.0
    %1124 = vmatprep.subr.mxu0 0.0
    %1125 = vmatpush1.msra.mxu0 0.0
    %1126 = vmatprep.subr.mxu0 0.0
    %1127 = vmatpush1.msra.mxu0 0.0
    %1128 = vmatprep.subr.mxu0 0.0
    %1129 = vmatpush1.msra.mxu0 0.0
    %1130 = vmatprep.subr.mxu0 0.0
    %1131 = vmatpush1.msra.mxu0 0.0
    %1132 = vmatprep.subr.mxu0 0.0
    %1133 = vmatpush1.msra.mxu0 0.0
    %1134 = vmatprep.subr.mxu0 0.0
    %1135 = vmatpush1.msra.mxu0 0.0
    %1136 = vmatprep.subr.mxu0 0.0
    %1137 = vmatpush1.msra.mxu0 0.0
    %1138 = vmatprep.subr.mxu0 0.0
    %1139 = vmatpush1.msra.mxu0 0.0
    %1140 = vmatprep.subr.mxu0 0.0
    %1141 = vmatpush1.msra.mxu0 0.0
    %1142 = vmatprep.mubr.f32.mxu0 0.0
    %1143 = vmatmul.mubr.f32.gmra.mrb[0].mxu0 %v969
    %v1144 = vpop.f32.mrb[0].mxu0
    %v1145 = vadd.f32 %v1077, %v1144
    %v1146 = vpop.f32.mrb[0].mxu0
    %1147 = vdwg.mxu0
    %v1148 = vld [vmem:[#allocation4 + $0x8] sm:$0x1]
    %v1149 = vlaneseq
    %v1150 = vshrl.u32 %v1149, 7
    %v1151 = vsub.s32 0, %v1150
    %v1152 = vrot.slane %v1148, %v1151
    %v1153 = vadd.f32 %v1145, %v1152
    %s1154 = scalar_lea.vmem [#allocation2], 1536
    %v1155 = vld [vmem:[%s1154] sm:$0xff]
    %v1156 = vld [vmem:[%s1154 + $0x8] sm:$0xff]
    %v1157 = vld [vmem:[%s1154 + $0x10] sm:$0xff]
    %v1158 = vld [vmem:[%s1154 + $0x18] sm:$0xff]
    %v1159 = vld [vmem:[%s1154 + $0x20] sm:$0xff]
    %v1160 = vld [vmem:[%s1154 + $0x28] sm:$0xff]
    %v1161 = vld [vmem:[%s1154 + $0x30] sm:$0xff]
    %v1162 = vld [vmem:[%s1154 + $0x38] sm:$0xff]
    %v1163 = vld [vmem:[%s1154 + $0x40] sm:$0xff]
    %v1164 = vld [vmem:[%s1154 + $0x48] sm:$0xff]
    %v1165 = vld [vmem:[%s1154 + $0x50] sm:$0xff]
    %v1166 = vld [vmem:[%s1154 + $0x58] sm:$0xff]
    %v1167 = vld [vmem:[%s1154 + $0x60] sm:$0xff]
    %v1168 = vld [vmem:[%s1154 + $0x68] sm:$0xff]
    %v1169 = vld [vmem:[%s1154 + $0x70] sm:$0xff]
    %v1170 = vld [vmem:[%s1154 + $0x78] sm:$0xff]
    %v1171 = vld [vmem:[#allocation4 + $0x9] sm:$0x1]
    %v1172 = vlaneseq
    %v1173 = vshrl.u32 %v1172, 7
    %v1174 = vsub.s32 0, %v1173
    %v1175 = vrot.slane %v1171, %v1174
    %1176 = vmatprep.subr.mxu0 0.0
    %1177 = vmatpush1.msra.mxu0 %v1155
    %1178 = vmatprep.subr.mxu0 0.0
    %1179 = vmatpush1.msra.mxu0 %v1156
    %1180 = vmatprep.subr.mxu0 0.0
    %1181 = vmatpush1.msra.mxu0 %v1157
    %1182 = vmatprep.subr.mxu0 0.0
    %1183 = vmatpush1.msra.mxu0 %v1158
    %1184 = vmatprep.subr.mxu0 0.0
    %1185 = vmatpush1.msra.mxu0 %v1159
    %1186 = vmatprep.subr.mxu0 0.0
    %1187 = vmatpush1.msra.mxu0 %v1160
    %1188 = vmatprep.subr.mxu0 0.0
    %1189 = vmatpush1.msra.mxu0 %v1161
    %1190 = vmatprep.subr.mxu0 0.0
    %1191 = vmatpush1.msra.mxu0 %v1162
    %1192 = vmatprep.subr.mxu0 0.0
    %1193 = vmatpush1.msra.mxu0 %v1163
    %1194 = vmatprep.subr.mxu0 0.0
    %1195 = vmatpush1.msra.mxu0 %v1164
    %1196 = vmatprep.subr.mxu0 0.0
    %1197 = vmatpush1.msra.mxu0 %v1165
    %1198 = vmatprep.subr.mxu0 0.0
    %1199 = vmatpush1.msra.mxu0 %v1166
    %1200 = vmatprep.subr.mxu0 0.0
    %1201 = vmatpush1.msra.mxu0 %v1167
    %1202 = vmatprep.subr.mxu0 0.0
    %1203 = vmatpush1.msra.mxu0 %v1168
    %1204 = vmatprep.subr.mxu0 0.0
    %1205 = vmatpush1.msra.mxu0 %v1169
    %1206 = vmatprep.subr.mxu0 0.0
    %1207 = vmatpush1.msra.mxu0 %v1170
    %1208 = vmatprep.subr.mxu0 0.0
    %1209 = vmatpush1.msra.mxu0 0.0
    %1210 = vmatprep.subr.mxu0 0.0
    %1211 = vmatpush1.msra.mxu0 0.0
    %1212 = vmatprep.subr.mxu0 0.0
    %1213 = vmatpush1.msra.mxu0 0.0
    %1214 = vmatprep.subr.mxu0 0.0
    %1215 = vmatpush1.msra.mxu0 0.0
    %1216 = vmatprep.subr.mxu0 0.0
    %1217 = vmatpush1.msra.mxu0 0.0
    %1218 = vmatprep.subr.mxu0 0.0
    %1219 = vmatpush1.msra.mxu0 0.0
    %1220 = vmatprep.subr.mxu0 0.0
    %1221 = vmatpush1.msra.mxu0 0.0
    %1222 = vmatprep.subr.mxu0 0.0
    %1223 = vmatpush1.msra.mxu0 0.0
    %1224 = vmatprep.subr.mxu0 0.0
    %1225 = vmatpush1.msra.mxu0 0.0
    %1226 = vmatprep.subr.mxu0 0.0
    %1227 = vmatpush1.msra.mxu0 0.0
    %1228 = vmatprep.subr.mxu0 0.0
    %1229 = vmatpush1.msra.mxu0 0.0
    %1230 = vmatprep.subr.mxu0 0.0
    %1231 = vmatpush1.msra.mxu0 0.0
    %1232 = vmatprep.subr.mxu0 0.0
    %1233 = vmatpush1.msra.mxu0 0.0
    %1234 = vmatprep.subr.mxu0 0.0
    %1235 = vmatpush1.msra.mxu0 0.0
    %1236 = vmatprep.subr.mxu0 0.0
    %1237 = vmatpush1.msra.mxu0 0.0
    %1238 = vmatprep.subr.mxu0 0.0
    %1239 = vmatpush1.msra.mxu0 0.0
    %1240 = vmatprep.mubr.f32.mxu0 0.0
    %1241 = vmatmul.mubr.f32.gmra.mrb[0].mxu0 %v1153
    %v1242 = vpop.f32.mrb[0].mxu0
    %v1243 = vadd.f32 %v1175, %v1242
    %v1244 = vpop.f32.mrb[0].mxu0
    %1245 = vdwg.mxu0
    %v1246 = vmax.f32 %v1243, 0.0
    %s1247 = scalar_lea.vmem [#allocation2], 1664
    %v1248 = vld [vmem:[%s1247] sm:$0xff]
    %v1249 = vld [vmem:[%s1247 + $0x8] sm:$0xff]
    %v1250 = vld [vmem:[%s1247 + $0x10] sm:$0xff]
    %v1251 = vld [vmem:[%s1247 + $0x18] sm:$0xff]
    %v1252 = vld [vmem:[%s1247 + $0x20] sm:$0xff]
    %v1253 = vld [vmem:[%s1247 + $0x28] sm:$0xff]
    %v1254 = vld [vmem:[%s1247 + $0x30] sm:$0xff]
    %v1255 = vld [vmem:[%s1247 + $0x38] sm:$0xff]
    %v1256 = vld [vmem:[%s1247 + $0x40] sm:$0xff]
    %v1257 = vld [vmem:[%s1247 + $0x48] sm:$0xff]
    %v1258 = vld [vmem:[%s1247 + $0x50] sm:$0xff]
    %v1259 = vld [vmem:[%s1247 + $0x58] sm:$0xff]
    %v1260 = vld [vmem:[%s1247 + $0x60] sm:$0xff]
    %v1261 = vld [vmem:[%s1247 + $0x68] sm:$0xff]
    %v1262 = vld [vmem:[%s1247 + $0x70] sm:$0xff]
    %v1263 = vld [vmem:[%s1247 + $0x78] sm:$0xff]
    %v1264 = vld [vmem:[#allocation4 + $0xa] sm:$0x1]
    %v1265 = vlaneseq
    %v1266 = vshrl.u32 %v1265, 7
    %v1267 = vsub.s32 0, %v1266
    %v1268 = vrot.slane %v1264, %v1267
    %1269 = vmatprep.subr.mxu0 0.0
    %1270 = vmatpush1.msra.mxu0 %v1248
    %1271 = vmatprep.subr.mxu0 0.0
    %1272 = vmatpush1.msra.mxu0 %v1249
    %1273 = vmatprep.subr.mxu0 0.0
    %1274 = vmatpush1.msra.mxu0 %v1250
    %1275 = vmatprep.subr.mxu0 0.0
    %1276 = vmatpush1.msra.mxu0 %v1251
    %1277 = vmatprep.subr.mxu0 0.0
    %1278 = vmatpush1.msra.mxu0 %v1252
    %1279 = vmatprep.subr.mxu0 0.0
    %1280 = vmatpush1.msra.mxu0 %v1253
    %1281 = vmatprep.subr.mxu0 0.0
    %1282 = vmatpush1.msra.mxu0 %v1254
    %1283 = vmatprep.subr.mxu0 0.0
    %1284 = vmatpush1.msra.mxu0 %v1255
    %1285 = vmatprep.subr.mxu0 0.0
    %1286 = vmatpush1.msra.mxu0 %v1256
    %1287 = vmatprep.subr.mxu0 0.0
    %1288 = vmatpush1.msra.mxu0 %v1257
    %1289 = vmatprep.subr.mxu0 0.0
    %1290 = vmatpush1.msra.mxu0 %v1258
    %1291 = vmatprep.subr.mxu0 0.0
    %1292 = vmatpush1.msra.mxu0 %v1259
    %1293 = vmatprep.subr.mxu0 0.0
    %1294 = vmatpush1.msra.mxu0 %v1260
    %1295 = vmatprep.subr.mxu0 0.0
    %1296 = vmatpush1.msra.mxu0 %v1261
    %1297 = vmatprep.subr.mxu0 0.0
    %1298 = vmatpush1.msra.mxu0 %v1262
    %1299 = vmatprep.subr.mxu0 0.0
    %1300 = vmatpush1.msra.mxu0 %v1263
    %1301 = vmatprep.subr.mxu0 0.0
    %1302 = vmatpush1.msra.mxu0 0.0
    %1303 = vmatprep.subr.mxu0 0.0
    %1304 = vmatpush1.msra.mxu0 0.0
    %1305 = vmatprep.subr.mxu0 0.0
    %1306 = vmatpush1.msra.mxu0 0.0
    %1307 = vmatprep.subr.mxu0 0.0
    %1308 = vmatpush1.msra.mxu0 0.0
    %1309 = vmatprep.subr.mxu0 0.0
    %1310 = vmatpush1.msra.mxu0 0.0
    %1311 = vmatprep.subr.mxu0 0.0
    %1312 = vmatpush1.msra.mxu0 0.0
    %1313 = vmatprep.subr.mxu0 0.0
    %1314 = vmatpush1.msra.mxu0 0.0
    %1315 = vmatprep.subr.mxu0 0.0
    %1316 = vmatpush1.msra.mxu0 0.0
    %1317 = vmatprep.subr.mxu0 0.0
    %1318 = vmatpush1.msra.mxu0 0.0
    %1319 = vmatprep.subr.mxu0 0.0
    %1320 = vmatpush1.msra.mxu0 0.0
    %1321 = vmatprep.subr.mxu0 0.0
    %1322 = vmatpush1.msra.mxu0 0.0
    %1323 = vmatprep.subr.mxu0 0.0
    %1324 = vmatpush1.msra.mxu0 0.0
    %1325 = vmatprep.subr.mxu0 0.0
    %1326 = vmatpush1.msra.mxu0 0.0
    %1327 = vmatprep.subr.mxu0 0.0
    %1328 = vmatpush1.msra.mxu0 0.0
    %1329 = vmatprep.subr.mxu0 0.0
    %1330 = vmatpush1.msra.mxu0 0.0
    %1331 = vmatprep.subr.mxu0 0.0
    %1332 = vmatpush1.msra.mxu0 0.0
    %1333 = vmatprep.mubr.f32.mxu0 0.0
    %1334 = vmatmul.mubr.f32.gmra.mrb[0].mxu0 %v1246
    %v1335 = vpop.f32.mrb[0].mxu0
    %v1336 = vadd.f32 %v1268, %v1335
    %v1337 = vpop.f32.mrb[0].mxu0
    %1338 = vdwg.mxu0
    %v1339 = vmax.f32 %v1336, 0.0
    %v1340 = vadd.f32 %v1339, %v1153
    %s1341 = scalar_lea.vmem [#allocation2], 1792
    %v1342 = vld [vmem:[%s1341] sm:$0xff]
    %v1343 = vld [vmem:[%s1341 + $0x8] sm:$0xff]
    %v1344 = vld [vmem:[%s1341 + $0x10] sm:$0xff]
    %v1345 = vld [vmem:[%s1341 + $0x18] sm:$0xff]
    %v1346 = vld [vmem:[%s1341 + $0x20] sm:$0xff]
    %v1347 = vld [vmem:[%s1341 + $0x28] sm:$0xff]
    %v1348 = vld [vmem:[%s1341 + $0x30] sm:$0xff]
    %v1349 = vld [vmem:[%s1341 + $0x38] sm:$0xff]
    %v1350 = vld [vmem:[%s1341 + $0x40] sm:$0xff]
    %v1351 = vld [vmem:[%s1341 + $0x48] sm:$0xff]
    %v1352 = vld [vmem:[%s1341 + $0x50] sm:$0xff]
    %v1353 = vld [vmem:[%s1341 + $0x58] sm:$0xff]
    %v1354 = vld [vmem:[%s1341 + $0x60] sm:$0xff]
    %v1355 = vld [vmem:[%s1341 + $0x68] sm:$0xff]
    %v1356 = vld [vmem:[%s1341 + $0x70] sm:$0xff]
    %v1357 = vld [vmem:[%s1341 + $0x78] sm:$0xff]
    %v1358 = vld [vmem:[#allocation4 + $0xb] sm:$0x1]
    %v1359 = vlaneseq
    %v1360 = vshrl.u32 %v1359, 7
    %v1361 = vsub.s32 0, %v1360
    %v1362 = vrot.slane %v1358, %v1361
    %1363 = vmatprep.subr.mxu0 0.0
    %1364 = vmatpush1.msra.mxu0 %v1342
    %1365 = vmatprep.subr.mxu0 0.0
    %1366 = vmatpush1.msra.mxu0 %v1343
    %1367 = vmatprep.subr.mxu0 0.0
    %1368 = vmatpush1.msra.mxu0 %v1344
    %1369 = vmatprep.subr.mxu0 0.0
    %1370 = vmatpush1.msra.mxu0 %v1345
    %1371 = vmatprep.subr.mxu0 0.0
    %1372 = vmatpush1.msra.mxu0 %v1346
    %1373 = vmatprep.subr.mxu0 0.0
    %1374 = vmatpush1.msra.mxu0 %v1347
    %1375 = vmatprep.subr.mxu0 0.0
    %1376 = vmatpush1.msra.mxu0 %v1348
    %1377 = vmatprep.subr.mxu0 0.0
    %1378 = vmatpush1.msra.mxu0 %v1349
    %1379 = vmatprep.subr.mxu0 0.0
    %1380 = vmatpush1.msra.mxu0 %v1350
    %1381 = vmatprep.subr.mxu0 0.0
    %1382 = vmatpush1.msra.mxu0 %v1351
    %1383 = vmatprep.subr.mxu0 0.0
    %1384 = vmatpush1.msra.mxu0 %v1352
    %1385 = vmatprep.subr.mxu0 0.0
    %1386 = vmatpush1.msra.mxu0 %v1353
    %1387 = vmatprep.subr.mxu0 0.0
    %1388 = vmatpush1.msra.mxu0 %v1354
    %1389 = vmatprep.subr.mxu0 0.0
    %1390 = vmatpush1.msra.mxu0 %v1355
    %1391 = vmatprep.subr.mxu0 0.0
    %1392 = vmatpush1.msra.mxu0 %v1356
    %1393 = vmatprep.subr.mxu0 0.0
    %1394 = vmatpush1.msra.mxu0 %v1357
    %1395 = vmatprep.subr.mxu0 0.0
    %1396 = vmatpush1.msra.mxu0 0.0
    %1397 = vmatprep.subr.mxu0 0.0
    %1398 = vmatpush1.msra.mxu0 0.0
    %1399 = vmatprep.subr.mxu0 0.0
    %1400 = vmatpush1.msra.mxu0 0.0
    %1401 = vmatprep.subr.mxu0 0.0
    %1402 = vmatpush1.msra.mxu0 0.0
    %1403 = vmatprep.subr.mxu0 0.0
    %1404 = vmatpush1.msra.mxu0 0.0
    %1405 = vmatprep.subr.mxu0 0.0
    %1406 = vmatpush1.msra.mxu0 0.0
    %1407 = vmatprep.subr.mxu0 0.0
    %1408 = vmatpush1.msra.mxu0 0.0
    %1409 = vmatprep.subr.mxu0 0.0
    %1410 = vmatpush1.msra.mxu0 0.0
    %1411 = vmatprep.subr.mxu0 0.0
    %1412 = vmatpush1.msra.mxu0 0.0
    %1413 = vmatprep.subr.mxu0 0.0
    %1414 = vmatpush1.msra.mxu0 0.0
    %1415 = vmatprep.subr.mxu0 0.0
    %1416 = vmatpush1.msra.mxu0 0.0
    %1417 = vmatprep.subr.mxu0 0.0
    %1418 = vmatpush1.msra.mxu0 0.0
    %1419 = vmatprep.subr.mxu0 0.0
    %1420 = vmatpush1.msra.mxu0 0.0
    %1421 = vmatprep.subr.mxu0 0.0
    %1422 = vmatpush1.msra.mxu0 0.0
    %1423 = vmatprep.subr.mxu0 0.0
    %1424 = vmatpush1.msra.mxu0 0.0
    %1425 = vmatprep.subr.mxu0 0.0
    %1426 = vmatpush1.msra.mxu0 0.0
    %1427 = vmatprep.mubr.f32.mxu0 0.0
    %1428 = vmatmul.mubr.f32.gmra.mrb[0].mxu0 %v1340
    %v1429 = vpop.f32.mrb[0].mxu0
    %v1430 = vadd.f32 %v1362, %v1429
    %v1431 = vpop.f32.mrb[0].mxu0
    %1432 = vdwg.mxu0
    %v1433 = vmax.f32 %v1430, 0.0
    %s1434 = scalar_lea.vmem [#allocation2], 1920
    %v1435 = vld [vmem:[%s1434] sm:$0xff]
    %v1436 = vld [vmem:[%s1434 + $0x8] sm:$0xff]
    %v1437 = vld [vmem:[%s1434 + $0x10] sm:$0xff]
    %v1438 = vld [vmem:[%s1434 + $0x18] sm:$0xff]
    %v1439 = vld [vmem:[%s1434 + $0x20] sm:$0xff]
    %v1440 = vld [vmem:[%s1434 + $0x28] sm:$0xff]
    %v1441 = vld [vmem:[%s1434 + $0x30] sm:$0xff]
    %v1442 = vld [vmem:[%s1434 + $0x38] sm:$0xff]
    %v1443 = vld [vmem:[%s1434 + $0x40] sm:$0xff]
    %v1444 = vld [vmem:[%s1434 + $0x48] sm:$0xff]
    %v1445 = vld [vmem:[%s1434 + $0x50] sm:$0xff]
    %v1446 = vld [vmem:[%s1434 + $0x58] sm:$0xff]
    %v1447 = vld [vmem:[%s1434 + $0x60] sm:$0xff]
    %v1448 = vld [vmem:[%s1434 + $0x68] sm:$0xff]
    %v1449 = vld [vmem:[%s1434 + $0x70] sm:$0xff]
    %v1450 = vld [vmem:[%s1434 + $0x78] sm:$0xff]
    %v1451 = vld [vmem:[#allocation4 + $0xc] sm:$0x1]
    %v1452 = vlaneseq
    %v1453 = vshrl.u32 %v1452, 7
    %v1454 = vsub.s32 0, %v1453
    %v1455 = vrot.slane %v1451, %v1454
    %1456 = vmatprep.subr.mxu0 0.0
    %1457 = vmatpush1.msra.mxu0 %v1435
    %1458 = vmatprep.subr.mxu0 0.0
    %1459 = vmatpush1.msra.mxu0 %v1436
    %1460 = vmatprep.subr.mxu0 0.0
    %1461 = vmatpush1.msra.mxu0 %v1437
    %1462 = vmatprep.subr.mxu0 0.0
    %1463 = vmatpush1.msra.mxu0 %v1438
    %1464 = vmatprep.subr.mxu0 0.0
    %1465 = vmatpush1.msra.mxu0 %v1439
    %1466 = vmatprep.subr.mxu0 0.0
    %1467 = vmatpush1.msra.mxu0 %v1440
    %1468 = vmatprep.subr.mxu0 0.0
    %1469 = vmatpush1.msra.mxu0 %v1441
    %1470 = vmatprep.subr.mxu0 0.0
    %1471 = vmatpush1.msra.mxu0 %v1442
    %1472 = vmatprep.subr.mxu0 0.0
    %1473 = vmatpush1.msra.mxu0 %v1443
    %1474 = vmatprep.subr.mxu0 0.0
    %1475 = vmatpush1.msra.mxu0 %v1444
    %1476 = vmatprep.subr.mxu0 0.0
    %1477 = vmatpush1.msra.mxu0 %v1445
    %1478 = vmatprep.subr.mxu0 0.0
    %1479 = vmatpush1.msra.mxu0 %v1446
    %1480 = vmatprep.subr.mxu0 0.0
    %1481 = vmatpush1.msra.mxu0 %v1447
    %1482 = vmatprep.subr.mxu0 0.0
    %1483 = vmatpush1.msra.mxu0 %v1448
    %1484 = vmatprep.subr.mxu0 0.0
    %1485 = vmatpush1.msra.mxu0 %v1449
    %1486 = vmatprep.subr.mxu0 0.0
    %1487 = vmatpush1.msra.mxu0 %v1450
    %1488 = vmatprep.subr.mxu0 0.0
    %1489 = vmatpush1.msra.mxu0 0.0
    %1490 = vmatprep.subr.mxu0 0.0
    %1491 = vmatpush1.msra.mxu0 0.0
    %1492 = vmatprep.subr.mxu0 0.0
    %1493 = vmatpush1.msra.mxu0 0.0
    %1494 = vmatprep.subr.mxu0 0.0
    %1495 = vmatpush1.msra.mxu0 0.0
    %1496 = vmatprep.subr.mxu0 0.0
    %1497 = vmatpush1.msra.mxu0 0.0
    %1498 = vmatprep.subr.mxu0 0.0
    %1499 = vmatpush1.msra.mxu0 0.0
    %1500 = vmatprep.subr.mxu0 0.0
    %1501 = vmatpush1.msra.mxu0 0.0
    %1502 = vmatprep.subr.mxu0 0.0
    %1503 = vmatpush1.msra.mxu0 0.0
    %1504 = vmatprep.subr.mxu0 0.0
    %1505 = vmatpush1.msra.mxu0 0.0
    %1506 = vmatprep.subr.mxu0 0.0
    %1507 = vmatpush1.msra.mxu0 0.0
    %1508 = vmatprep.subr.mxu0 0.0
    %1509 = vmatpush1.msra.mxu0 0.0
    %1510 = vmatprep.subr.mxu0 0.0
    %1511 = vmatpush1.msra.mxu0 0.0
    %1512 = vmatprep.subr.mxu0 0.0
    %1513 = vmatpush1.msra.mxu0 0.0
    %1514 = vmatprep.subr.mxu0 0.0
    %1515 = vmatpush1.msra.mxu0 0.0
    %1516 = vmatprep.subr.mxu0 0.0
    %1517 = vmatpush1.msra.mxu0 0.0
    %1518 = vmatprep.subr.mxu0 0.0
    %1519 = vmatpush1.msra.mxu0 0.0
    %1520 = vmatprep.mubr.f32.mxu0 0.0
    %1521 = vmatmul.mubr.f32.gmra.mrb[0].mxu0 %v1433
    %v1522 = vpop.f32.mrb[0].mxu0
    %v1523 = vadd.f32 %v1455, %v1522
    %v1524 = vpop.f32.mrb[0].mxu0
    %1525 = vdwg.mxu0
    %v1526 = vmax.f32 %v1523, 0.0
    %v1527 = vadd.f32 %v1526, %v1340
    %s1528 = scalar_lea.vmem [#allocation2], 2048
    %v1529 = vld [vmem:[%s1528] sm:$0xff]
    %v1530 = vld [vmem:[%s1528 + $0x8] sm:$0xff]
    %v1531 = vld [vmem:[%s1528 + $0x10] sm:$0xff]
    %v1532 = vld [vmem:[%s1528 + $0x18] sm:$0xff]
    %v1533 = vld [vmem:[%s1528 + $0x20] sm:$0xff]
    %v1534 = vld [vmem:[%s1528 + $0x28] sm:$0xff]
    %v1535 = vld [vmem:[%s1528 + $0x30] sm:$0xff]
    %v1536 = vld [vmem:[%s1528 + $0x38] sm:$0xff]
    %v1537 = vld [vmem:[%s1528 + $0x40] sm:$0xff]
    %v1538 = vld [vmem:[%s1528 + $0x48] sm:$0xff]
    %v1539 = vld [vmem:[%s1528 + $0x50] sm:$0xff]
    %v1540 = vld [vmem:[%s1528 + $0x58] sm:$0xff]
    %v1541 = vld [vmem:[%s1528 + $0x60] sm:$0xff]
    %v1542 = vld [vmem:[%s1528 + $0x68] sm:$0xff]
    %v1543 = vld [vmem:[%s1528 + $0x70] sm:$0xff]
    %v1544 = vld [vmem:[%s1528 + $0x78] sm:$0xff]
    %v1545 = vld [vmem:[#allocation4 + $0xd] sm:$0x1]
    %v1546 = vlaneseq
    %v1547 = vshrl.u32 %v1546, 7
    %v1548 = vsub.s32 0, %v1547
    %v1549 = vrot.slane %v1545, %v1548
    %1550 = vmatprep.subr.mxu0 0.0
    %1551 = vmatpush1.msra.mxu0 %v1529
    %1552 = vmatprep.subr.mxu0 0.0
    %1553 = vmatpush1.msra.mxu0 %v1530
    %1554 = vmatprep.subr.mxu0 0.0
    %1555 = vmatpush1.msra.mxu0 %v1531
    %1556 = vmatprep.subr.mxu0 0.0
    %1557 = vmatpush1.msra.mxu0 %v1532
    %1558 = vmatprep.subr.mxu0 0.0
    %1559 = vmatpush1.msra.mxu0 %v1533
    %1560 = vmatprep.subr.mxu0 0.0
    %1561 = vmatpush1.msra.mxu0 %v1534
    %1562 = vmatprep.subr.mxu0 0.0
    %1563 = vmatpush1.msra.mxu0 %v1535
    %1564 = vmatprep.subr.mxu0 0.0
    %1565 = vmatpush1.msra.mxu0 %v1536
    %1566 = vmatprep.subr.mxu0 0.0
    %1567 = vmatpush1.msra.mxu0 %v1537
    %1568 = vmatprep.subr.mxu0 0.0
    %1569 = vmatpush1.msra.mxu0 %v1538
    %1570 = vmatprep.subr.mxu0 0.0
    %1571 = vmatpush1.msra.mxu0 %v1539
    %1572 = vmatprep.subr.mxu0 0.0
    %1573 = vmatpush1.msra.mxu0 %v1540
    %1574 = vmatprep.subr.mxu0 0.0
    %1575 = vmatpush1.msra.mxu0 %v1541
    %1576 = vmatprep.subr.mxu0 0.0
    %1577 = vmatpush1.msra.mxu0 %v1542
    %1578 = vmatprep.subr.mxu0 0.0
    %1579 = vmatpush1.msra.mxu0 %v1543
    %1580 = vmatprep.subr.mxu0 0.0
    %1581 = vmatpush1.msra.mxu0 %v1544
    %1582 = vmatprep.subr.mxu0 0.0
    %1583 = vmatpush1.msra.mxu0 0.0
    %1584 = vmatprep.subr.mxu0 0.0
    %1585 = vmatpush1.msra.mxu0 0.0
    %1586 = vmatprep.subr.mxu0 0.0
    %1587 = vmatpush1.msra.mxu0 0.0
    %1588 = vmatprep.subr.mxu0 0.0
    %1589 = vmatpush1.msra.mxu0 0.0
    %1590 = vmatprep.subr.mxu0 0.0
    %1591 = vmatpush1.msra.mxu0 0.0
    %1592 = vmatprep.subr.mxu0 0.0
    %1593 = vmatpush1.msra.mxu0 0.0
    %1594 = vmatprep.subr.mxu0 0.0
    %1595 = vmatpush1.msra.mxu0 0.0
    %1596 = vmatprep.subr.mxu0 0.0
    %1597 = vmatpush1.msra.mxu0 0.0
    %1598 = vmatprep.subr.mxu0 0.0
    %1599 = vmatpush1.msra.mxu0 0.0
    %1600 = vmatprep.subr.mxu0 0.0
    %1601 = vmatpush1.msra.mxu0 0.0
    %1602 = vmatprep.subr.mxu0 0.0
    %1603 = vmatpush1.msra.mxu0 0.0
    %1604 = vmatprep.subr.mxu0 0.0
    %1605 = vmatpush1.msra.mxu0 0.0
    %1606 = vmatprep.subr.mxu0 0.0
    %1607 = vmatpush1.msra.mxu0 0.0
    %1608 = vmatprep.subr.mxu0 0.0
    %1609 = vmatpush1.msra.mxu0 0.0
    %1610 = vmatprep.subr.mxu0 0.0
    %1611 = vmatpush1.msra.mxu0 0.0
    %1612 = vmatprep.subr.mxu0 0.0
    %1613 = vmatpush1.msra.mxu0 0.0
    %1614 = vmatprep.mubr.f32.mxu0 0.0
    %1615 = vmatmul.mubr.f32.gmra.mrb[0].mxu0 %v1527
    %v1616 = vpop.f32.mrb[0].mxu0
    %v1617 = vadd.f32 %v1549, %v1616
    %v1618 = vpop.f32.mrb[0].mxu0
    %1619 = vdwg.mxu0
    %vm1620 = vcmp.lt.s32.totalorder %v132, 16
    %v1621 = vsel %vm1620, %v781, -1e+30
    %1622 = vmax.xlane.f32.xlu0 %v1621
    %v1623 = vpop.xlane.xlu0 %1622
    %v1624 = vsub.f32 %v1621, %v1623
    %v1625 = vmul.f32 %v1624, 1.442695
    %v1626 = vpow.pop %v1625
    %1627 = vadd.xlane.f32.xlu0 %v1626
    %v1628 = vpop.xlane.xlu0 %1627
    %v1629 = vlog2.pop %v1628
    %v1630 = vmul.f32 %v1629, 0.6931472
    %v1631 = vsub.f32 %v1624, %v1630
    %1632 = vst [vmem:[%s3] sm:$0xff] %v1631
    %vm1633 = vcmp.lt.s32.totalorder %v132, 100
    %v1634 = vsel %vm1633, %v968, -1e+30
    %1635 = vmax.xlane.f32.xlu0 %v1634
    %v1636 = vpop.xlane.xlu0 %1635
    %v1637 = vsub.f32 %v1634, %v1636
    %v1638 = vmul.f32 %v1637, 1.442695
    %v1639 = vpow.pop %v1638
    %1640 = vadd.xlane.f32.xlu0 %v1639
    %v1641 = vpop.xlane.xlu0 %1640
    %v1642 = vlog2.pop %v1641
    %v1643 = vmul.f32 %v1642, 0.6931472
    %v1644 = vsub.f32 %v1637, %v1643
    %1645 = vst [vmem:[%s3 + $0x8] sm:$0xff] %v1644
    %vm1646 = vcmp.lt.s32.totalorder %v132, 4
    %v1647 = vsel %vm1646, %v1617, -1e+30
    %1648 = vmax.xlane.f32.xlu0 %v1647
    %v1649 = vpop.xlane.xlu0 %1648
    %v1650 = vsub.f32 %v1647, %v1649
    %v1651 = vmul.f32 %v1650, 1.442695
    %v1652 = vpow.pop %v1651
    %1653 = vadd.xlane.f32.xlu0 %v1652
    %v1654 = vpop.xlane.xlu0 %1653
    %v1655 = vlog2.pop %v1654
    %v1656 = vmul.f32 %v1655, 0.6931472
    %v1657 = vsub.f32 %v1650, %v1656
    %1658 = vst [vmem:[%s3 + $0x10] sm:$0xff] %v1657
    // Predicated region
    $region22: #{_policy_step.1} parent=1 // pred_check
      _
    $region23: #{_policy_step.1} parent=1 // pred_check_branch
      %1660 = sbr.rel (0) target = $region25
    $region24: #{_policy_step.1} parent=1 // pred_region
      _
    $region25: #{_policy_step.1} parent=1 // pred_fallthru
      _
    // Predicated region
    $region26: #{_policy_step.1} parent=1 // pred_check
      _
    $region27: #{_policy_step.1} parent=1 // pred_check_branch
      %1662 = sbr.rel (0) target = $region29
    $region28: #{_policy_step.1} parent=1 // pred_region
      _
    $region29: #{_policy_step.1} parent=1 // pred_fallthru
      _
    %1663 = vsyncpa [#allocation3], 1
    %1664 = vsyncpa [#allocation5], 1

</llo_original>
